<compile_context>
chip_gen: v6e
topology: v6e:2x2x1
jax: 0.10.0
libtpu: 0.0.40
codegen_flags: <defaults>
</compile_context>

<pallas_src>
import functools

import jax
import jax.numpy as jnp
from jax.experimental import pallas as pl
from jax.experimental.pallas import tpu as pltpu


DIM = 64
LAYERS = (128, 64, 32, 8)

# v7x has 64 MiB physical VMEM; keep double-buffered (TB,64) bf16 inputs plus
# f32 intermediates comfortably under the 32 MiB scoped limit on all chips.
_MAX_TILE = 16384


def ncf_mlp_kernel(u_ref, i_ref,
                   w1u_ref, w1i_ref, b1_ref,
                   w2_ref, b2_ref,
                   w3_ref, b3_ref,
                   wf_ref, bf_ref,
                   out_ref):
    """One batch tile of the NCF MLP.

    u_ref, i_ref : (TB, dim) bf16 gathered user/item embeddings
    w*_ref       : bf16 weights stored as (in_features, out_features)
    b*_ref       : (1, out) f32 biases (VMEM-resident)
    wf_ref       : (1, 8)  bf16 final-layer weight row
    bf_ref       : (1, 1)  f32 final-layer bias (SMEM scalar)
    out_ref      : (1, TB) f32 lane-dense predictions for this tile
    """
    # Layer 1 (128 -> 64) without materializing torch.cat([u, i], dim=1):
    #   cat([u, i]) @ W1 == u @ W1[:dim] + i @ W1[dim:]
    x = jnp.dot(u_ref[...], w1u_ref[...], preferred_element_type=jnp.float32)
    x = x + jnp.dot(i_ref[...], w1i_ref[...], preferred_element_type=jnp.float32)
    x = jnp.maximum(x + b1_ref[...], 0.0).astype(jnp.bfloat16)

    # Layer 2 (64 -> 32), ReLU
    x = jnp.dot(x, w2_ref[...], preferred_element_type=jnp.float32)
    x = jnp.maximum(x + b2_ref[...], 0.0).astype(jnp.bfloat16)

    # Layer 3 (32 -> 8), ReLU
    x = jnp.dot(x, w3_ref[...], preferred_element_type=jnp.float32)
    x = jnp.maximum(x + b3_ref[...], 0.0).astype(jnp.bfloat16)

    # Final layer (8 -> 1), lane-dense: contract (1,8) with (TB,8) on the
    # feature axis -> (1, TB): batch lands on the lane axis of the output.
    y = jax.lax.dot_general(wf_ref[...], x,
                            (((1,), (1,)), ((), ())),
                            preferred_element_type=jnp.float32)
    out_ref[...] = y + bf_ref[0, 0]


def _round_up(x, m):
    return ((x + m - 1) // m) * m


def _choose_tiling(batch, tile):
    """Balanced batch tiling: tb multiple of 128, padding < 1 block, even #tiles."""
    cap = _round_up(max(min(int(tile), _MAX_TILE), 128), 128)
    num_tiles = max(1, -(-batch // cap))
    if num_tiles > 1 and num_tiles % 2:
        num_tiles += 1                       # feed both v7x TensorCores
    tb = _round_up(-(-batch // num_tiles), 128)
    num_tiles = max(1, -(-batch // tb))
    if num_tiles > 1 and num_tiles % 2:
        num_tiles += 1                       # extra padded tile is cheap
    return tb, num_tiles


@functools.partial(jax.jit, static_argnames=("tile", "allow_fusion"))
def ncf_forward(user_idx, item_idx, params, *, tile=8192, allow_fusion=True):
    """NCF forward: embedding gather (fused into the kernel DMA when possible)
    + fused MLP in Pallas."""
    # TODO(synk): for dim >> 64, fuse the gather fully into the kernel via
    # PrefetchScalarGridSpec(num_scalar_prefetch=2) + manual make_async_copy
    # from pl.ANY tables; at dim=64 (128 B rows) that path is descriptor-bound,
    # so we rely on allow_input_fusion instead.
    B = user_idx.shape[0]
    tb, num_tiles = _choose_tiling(B, tile)
    b_pad = tb * num_tiles

    u_idx = jnp.pad(user_idx, (0, b_pad - B))
    i_idx = jnp.pad(item_idx, (0, b_pad - B))

    uembd = jnp.take(params["u_embd"], u_idx, axis=0)   # (B_pad, dim) bf16
    iembd = jnp.take(params["i_embd"], i_idx, axis=0)   # (B_pad, dim) bf16
    dim = uembd.shape[1]

    def resident(shape):
        # Same block every grid step -> stays VMEM-resident (no re-DMA).
        return pl.BlockSpec(shape, lambda i: (0,) * len(shape))

    compiler_params = pltpu.CompilerParams(
        dimension_semantics=("parallel",),
        vmem_limit_bytes=32 * 1024 * 1024,
        # Let XLA fuse the embedding gathers (operands 0, 1) into the kernel's
        # input pipeline, eliminating the HBM round-trip of the gathered rows.
        allow_input_fusion=[0, 1] if allow_fusion else None,
    )

    out = pl.pallas_call(
        ncf_mlp_kernel,
        grid=(num_tiles,),
        in_specs=[
            pl.BlockSpec((tb, dim), lambda i: (i, 0)),           # user embd tile
            pl.BlockSpec((tb, dim), lambda i: (i, 0)),           # item embd tile
            resident(params["w1u"].shape),
            resident(params["w1i"].shape),
            resident(params["b1"].shape),
            resident(params["w2"].shape),
            resident(params["b2"].shape),
            resident(params["w3"].shape),
            resident(params["b3"].shape),
            resident(params["wf"].shape),
            pl.BlockSpec(memory_space=pltpu.MemorySpace.SMEM),   # final bias scalar
        ],
        out_specs=pl.BlockSpec((1, tb), lambda i: (0, i)),
        out_shape=jax.ShapeDtypeStruct((1, b_pad), jnp.float32),
        compiler_params=compiler_params,
    )(uembd, iembd,
      params["w1u"], params["w1i"], params["b1"],
      params["w2"], params["b2"],
      params["w3"], params["b3"],
      params["wf"], params["bf"])

    # prediction.flatten()
    return out[0, :B]


def run_ncf(user_idx, item_idx, params, *, tile=8192):
    """Call the kernel; fall back to the no-input-fusion path if the fused
    lowering is rejected on this backend."""
    try:
        return jax.block_until_ready(
            ncf_forward(user_idx, item_idx, params, tile=tile, allow_fusion=True))
    except Exception:
        return jax.block_until_ready(
            ncf_forward(user_idx, item_idx, params, tile=tile, allow_fusion=False))


def init_params(key, user_num, item_num, dim=DIM, layers=LAYERS):
    assert 2 * dim == layers[0], "cat([u, i], dim=1) must match first fc layer"
    keys = jax.random.split(key, 10)
    scale = 0.1

    def lin(kw, kb, fin, fout):
        # stored as (in_features, out_features), i.e. transpose of nn.Linear.weight
        w = scale * jax.random.normal(kw, (fin, fout), jnp.float32)
        b = scale * jax.random.normal(kb, (1, fout), jnp.float32)
        return w, b

    w1, b1 = lin(keys[2], keys[3], layers[0], layers[1])
    w2, b2 = lin(keys[4], keys[5], layers[1], layers[2])
    w3, b3 = lin(keys[6], keys[7], layers[2], layers[3])
    wf, bf = lin(keys[8], keys[9], layers[3], 1)

    return {
        # embedding tables kept bf16 in HBM (halves gather traffic)
        "u_embd": (scale * jax.random.normal(keys[0], (user_num, dim),
                                             jnp.float32)).astype(jnp.bfloat16),
        "i_embd": (scale * jax.random.normal(keys[1], (item_num, dim),
                                             jnp.float32)).astype(jnp.bfloat16),
        # layer-1 weight pre-split into user/item halves of the concat
        "w1u": w1[:dim].astype(jnp.bfloat16),
        "w1i": w1[dim:].astype(jnp.bfloat16),
        "b1": b1,
        "w2": w2.astype(jnp.bfloat16), "b2": b2,
        "w3": w3.astype(jnp.bfloat16), "b3": b3,
        # final layer as a (1, 8) row (lane-dense output) + (1,1) SMEM scalar bias
        "wf": wf.T.astype(jnp.bfloat16),
        "bf": bf.reshape(1, 1),
    }


def ncf_reference(user_idx, item_idx, params):
    """Pure-JAX (f32 math) reference for sanity checking."""
    u = jnp.take(params["u_embd"], user_idx, axis=0).astype(jnp.float32)
    i = jnp.take(params["i_embd"], item_idx, axis=0).astype(jnp.float32)
    x = jnp.concatenate([u, i], axis=1)
    w1 = jnp.concatenate([params["w1u"], params["w1i"]], axis=0).astype(jnp.float32)
    x = jnp.maximum(x @ w1 + params["b1"], 0.0)
    x = jnp.maximum(x @ params["w2"].astype(jnp.float32) + params["b2"], 0.0)
    x = jnp.maximum(x @ params["w3"].astype(jnp.float32) + params["b3"], 0.0)
    y = x @ params["wf"].astype(jnp.float32).T + params["bf"]
    return y.reshape(-1)


if __name__ == "__main__":
    key = jax.random.PRNGKey(0)
    k_param, k_u, k_i, k_u2, k_i2 = jax.random.split(key, 5)

    user_num, item_num, dim = 50, 40, 64   # 2*dim = 128 = layers[0]
    params = init_params(k_param, user_num, item_num, dim)

    # Small single-tile case.
    batch = 8
    user_idx = jax.random.randint(k_u, (batch,), 0, user_num, dtype=jnp.int32)
    item_idx = jax.random.randint(k_i, (batch,), 0, item_num, dtype=jnp.int32)

    pred = run_ncf(user_idx, item_idx, params)
    ref = ncf_reference(user_idx, item_idx, params)
    assert pred.shape == (batch,)
    # bf16 weights/activations with f32 accumulation -> loosened tolerance
    assert jnp.allclose(pred, ref, atol=2e-2, rtol=2e-2), (pred, ref)

    # Multi-tile case exercising the balanced / even-tile-count path
    # (tile=256 -> tb=256, num_tiles=2, pad=512).
    batch2 = 300
    user_idx2 = jax.random.randint(k_u2, (batch2,), 0, user_num, dtype=jnp.int32)
    item_idx2 = jax.random.randint(k_i2, (batch2,), 0, item_num, dtype=jnp.int32)

    pred2 = run_ncf(user_idx2, item_idx2, params, tile=256)
    ref2 = ncf_reference(user_idx2, item_idx2, params)
    assert pred2.shape == (batch2,)
    assert jnp.allclose(pred2, ref2, atol=2e-2, rtol=2e-2), (pred2, ref2)

    print("KERNEL_OK")
</pallas_src>

<mosaic_0001>
module attributes {stable_mosaic.version = 11 : i64} {
  func.func @ncf_mlp_kernel(%arg0: i32, %arg1: memref<128x64xbf16, #tpu.memory_space<vmem>>, %arg2: memref<128x64xbf16, #tpu.memory_space<vmem>>, %arg3: memref<64x64xbf16, #tpu.memory_space<vmem>>, %arg4: memref<64x64xbf16, #tpu.memory_space<vmem>>, %arg5: memref<1x64xf32, #tpu.memory_space<vmem>>, %arg6: memref<64x32xbf16, #tpu.memory_space<vmem>>, %arg7: memref<1x32xf32, #tpu.memory_space<vmem>>, %arg8: memref<32x8xbf16, #tpu.memory_space<vmem>>, %arg9: memref<1x8xf32, #tpu.memory_space<vmem>>, %arg10: memref<1x8xbf16, #tpu.memory_space<vmem>>, %arg11: memref<1x1xf32, #tpu.memory_space<smem>>, %arg12: memref<1x128xf32, #tpu.memory_space<vmem>>) attributes {dimension_semantics = [#tpu.dimension_semantics<parallel>], iteration_bounds = array<i64: 1>, scalar_prefetch = 0 : i64, scratch_operands = 0 : i64, tpu.core_type = #tpu.core_type<tc>, window_params = [{transform_indices = @transform_0, window_bounds = array<i64: 128, 64>}, {transform_indices = @transform_1, window_bounds = array<i64: 128, 64>}, {pipeline_mode = #tpu.pipeline_mode<synchronous>, transform_indices = @transform_2, window_bounds = array<i64: 64, 64>}, {pipeline_mode = #tpu.pipeline_mode<synchronous>, transform_indices = @transform_3, window_bounds = array<i64: 64, 64>}, {pipeline_mode = #tpu.pipeline_mode<synchronous>, transform_indices = @transform_4, window_bounds = array<i64: 1, 64>}, {pipeline_mode = #tpu.pipeline_mode<synchronous>, transform_indices = @transform_5, window_bounds = array<i64: 64, 32>}, {pipeline_mode = #tpu.pipeline_mode<synchronous>, transform_indices = @transform_6, window_bounds = array<i64: 1, 32>}, {pipeline_mode = #tpu.pipeline_mode<synchronous>, transform_indices = @transform_7, window_bounds = array<i64: 32, 8>}, {pipeline_mode = #tpu.pipeline_mode<synchronous>, transform_indices = @transform_8, window_bounds = array<i64: 1, 8>}, {pipeline_mode = #tpu.pipeline_mode<synchronous>, transform_indices = @transform_9, window_bounds = array<i64: 1, 8>}, {transform_indices = @transform_10, window_bounds = array<i64: 1, 1>}, {transform_indices = @transform_11, window_bounds = array<i64: 1, 128>}]} {
    %c0 = arith.constant 0 : index
    %c0_0 = arith.constant 0 : index
    %0 = vector.load %arg1[%c0, %c0_0] : memref<128x64xbf16, #tpu.memory_space<vmem>>, vector<128x64xbf16>
    %c0_1 = arith.constant 0 : index
    %c0_2 = arith.constant 0 : index
    %1 = vector.load %arg3[%c0_1, %c0_2] : memref<64x64xbf16, #tpu.memory_space<vmem>>, vector<64x64xbf16>
    %cst = arith.constant dense<0.000000e+00> : vector<128x64xf32>
    %2 = tpu.matmul %0, %1, %cst {dimension_numbers = #tpu.dot_dimension_numbers<[1], [0], [0], [1], [0, 0, 1, 1], [], []>} : vector<128x64xbf16>, vector<64x64xbf16>, vector<128x64xf32> -> vector<128x64xf32>
    %c0_3 = arith.constant 0 : index
    %c0_4 = arith.constant 0 : index
    %3 = vector.load %arg2[%c0_3, %c0_4] : memref<128x64xbf16, #tpu.memory_space<vmem>>, vector<128x64xbf16>
    %c0_5 = arith.constant 0 : index
    %c0_6 = arith.constant 0 : index
    %4 = vector.load %arg4[%c0_5, %c0_6] : memref<64x64xbf16, #tpu.memory_space<vmem>>, vector<64x64xbf16>
    %cst_7 = arith.constant dense<0.000000e+00> : vector<128x64xf32>
    %5 = tpu.matmul %3, %4, %cst_7 {dimension_numbers = #tpu.dot_dimension_numbers<[1], [0], [0], [1], [0, 0, 1, 1], [], []>} : vector<128x64xbf16>, vector<64x64xbf16>, vector<128x64xf32> -> vector<128x64xf32>
    %6 = arith.addf %2, %5 : vector<128x64xf32>
    %c0_8 = arith.constant 0 : index
    %c0_9 = arith.constant 0 : index
    %7 = vector.load %arg5[%c0_8, %c0_9] : memref<1x64xf32, #tpu.memory_space<vmem>>, vector<1x64xf32>
    %8 = vector.broadcast %7 : vector<1x64xf32> to vector<128x64xf32>
    %9 = arith.addf %6, %8 : vector<128x64xf32>
    %cst_10 = arith.constant 0.000000e+00 : f32
    %10 = vector.broadcast %cst_10 : f32 to vector<128x64xf32>
    %11 = arith.maximumf %9, %10 : vector<128x64xf32>
    %12 = arith.truncf %11 : vector<128x64xf32> to vector<128x64xbf16>
    %c0_11 = arith.constant 0 : index
    %c0_12 = arith.constant 0 : index
    %13 = vector.load %arg6[%c0_11, %c0_12] : memref<64x32xbf16, #tpu.memory_space<vmem>>, vector<64x32xbf16>
    %cst_13 = arith.constant dense<0.000000e+00> : vector<128x32xf32>
    %14 = tpu.matmul %12, %13, %cst_13 {dimension_numbers = #tpu.dot_dimension_numbers<[1], [0], [0], [1], [0, 0, 1, 1], [], []>} : vector<128x64xbf16>, vector<64x32xbf16>, vector<128x32xf32> -> vector<128x32xf32>
    %c0_14 = arith.constant 0 : index
    %c0_15 = arith.constant 0 : index
    %15 = vector.load %arg7[%c0_14, %c0_15] : memref<1x32xf32, #tpu.memory_space<vmem>>, vector<1x32xf32>
    %16 = vector.broadcast %15 : vector<1x32xf32> to vector<128x32xf32>
    %17 = arith.addf %14, %16 : vector<128x32xf32>
    %cst_16 = arith.constant 0.000000e+00 : f32
    %18 = vector.broadcast %cst_16 : f32 to vector<128x32xf32>
    %19 = arith.maximumf %17, %18 : vector<128x32xf32>
    %20 = arith.truncf %19 : vector<128x32xf32> to vector<128x32xbf16>
    %c0_17 = arith.constant 0 : index
    %c0_18 = arith.constant 0 : index
    %21 = vector.load %arg8[%c0_17, %c0_18] : memref<32x8xbf16, #tpu.memory_space<vmem>>, vector<32x8xbf16>
    %cst_19 = arith.constant dense<0.000000e+00> : vector<128x8xf32>
    %22 = tpu.matmul %20, %21, %cst_19 {dimension_numbers = #tpu.dot_dimension_numbers<[1], [0], [0], [1], [0, 0, 1, 1], [], []>} : vector<128x32xbf16>, vector<32x8xbf16>, vector<128x8xf32> -> vector<128x8xf32>
    %c0_20 = arith.constant 0 : index
    %c0_21 = arith.constant 0 : index
    %23 = vector.load %arg9[%c0_20, %c0_21] : memref<1x8xf32, #tpu.memory_space<vmem>>, vector<1x8xf32>
    %24 = vector.broadcast %23 : vector<1x8xf32> to vector<128x8xf32>
    %25 = arith.addf %22, %24 : vector<128x8xf32>
    %cst_22 = arith.constant 0.000000e+00 : f32
    %26 = vector.broadcast %cst_22 : f32 to vector<128x8xf32>
    %27 = arith.maximumf %25, %26 : vector<128x8xf32>
    %28 = arith.truncf %27 : vector<128x8xf32> to vector<128x8xbf16>
    %c0_23 = arith.constant 0 : index
    %c0_24 = arith.constant 0 : index
    %29 = vector.load %arg10[%c0_23, %c0_24] : memref<1x8xbf16, #tpu.memory_space<vmem>>, vector<1x8xbf16>
    %cst_25 = arith.constant dense<0.000000e+00> : vector<1x128xf32>
    %30 = tpu.matmul %29, %28, %cst_25 {dimension_numbers = #tpu.dot_dimension_numbers<[1], [1], [0], [0], [0, 0, 1, 0], [], []>} : vector<1x8xbf16>, vector<128x8xbf16>, vector<1x128xf32> -> vector<1x128xf32>
    %c0_26 = arith.constant 0 : index
    %c0_27 = arith.constant 0 : index
    %31 = memref.load %arg11[%c0_26, %c0_27] : memref<1x1xf32, #tpu.memory_space<smem>>
    %32 = vector.broadcast %31 : f32 to vector<1x128xf32>
    %33 = arith.addf %30, %32 : vector<1x128xf32>
    %c0_28 = arith.constant 0 : index
    %c0_29 = arith.constant 0 : index
    %34 = vector.load %arg12[%c0_28, %c0_29] : memref<1x128xf32, #tpu.memory_space<vmem>>, vector<1x128xf32>
    tpu.vector_store %arg12[%c0_28, %c0_29], %33 {strides = array<i32>} : memref<1x128xf32, #tpu.memory_space<vmem>>, vector<1x128xf32>,
    return
  }
  func.func @transform_0(%arg0: i32) -> (i32, i32) {
    %c0_i32 = arith.constant 0 : i32
    %c0_i32_0 = arith.constant 0 : i32
    return %arg0, %c0_i32 : i32, i32
  }
  func.func @transform_1(%arg0: i32) -> (i32, i32) {
    %c0_i32 = arith.constant 0 : i32
    %c0_i32_0 = arith.constant 0 : i32
    return %arg0, %c0_i32 : i32, i32
  }
  func.func @transform_2(%arg0: i32) -> (i32, i32) {
    %c0_i32 = arith.constant 0 : i32
    %c0_i32_0 = arith.constant 0 : i32
    %c0_i32_1 = arith.constant 0 : i32
    return %c0_i32, %c0_i32_0 : i32, i32
  }
  func.func @transform_3(%arg0: i32) -> (i32, i32) {
    %c0_i32 = arith.constant 0 : i32
    %c0_i32_0 = arith.constant 0 : i32
    %c0_i32_1 = arith.constant 0 : i32
    return %c0_i32, %c0_i32_0 : i32, i32
  }
  func.func @transform_4(%arg0: i32) -> (i32, i32) {
    %c0_i32 = arith.constant 0 : i32
    %c0_i32_0 = arith.constant 0 : i32
    %c0_i32_1 = arith.constant 0 : i32
    return %c0_i32, %c0_i32_0 : i32, i32
  }
  func.func @transform_5(%arg0: i32) -> (i32, i32) {
    %c0_i32 = arith.constant 0 : i32
    %c0_i32_0 = arith.constant 0 : i32
    %c0_i32_1 = arith.constant 0 : i32
    return %c0_i32, %c0_i32_0 : i32, i32
  }
  func.func @transform_6(%arg0: i32) -> (i32, i32) {
    %c0_i32 = arith.constant 0 : i32
    %c0_i32_0 = arith.constant 0 : i32
    %c0_i32_1 = arith.constant 0 : i32
    return %c0_i32, %c0_i32_0 : i32, i32
  }
  func.func @transform_7(%arg0: i32) -> (i32, i32) {
    %c0_i32 = arith.constant 0 : i32
    %c0_i32_0 = arith.constant 0 : i32
    %c0_i32_1 = arith.constant 0 : i32
    return %c0_i32, %c0_i32_0 : i32, i32
  }
  func.func @transform_8(%arg0: i32) -> (i32, i32) {
    %c0_i32 = arith.constant 0 : i32
    %c0_i32_0 = arith.constant 0 : i32
    %c0_i32_1 = arith.constant 0 : i32
    return %c0_i32, %c0_i32_0 : i32, i32
  }
  func.func @transform_9(%arg0: i32) -> (i32, i32) {
    %c0_i32 = arith.constant 0 : i32
    %c0_i32_0 = arith.constant 0 : i32
    %c0_i32_1 = arith.constant 0 : i32
    return %c0_i32, %c0_i32_0 : i32, i32
  }
  func.func @transform_10(%arg0: i32) -> (i32, i32) {
    %c0_i32 = arith.constant 0 : i32
    %c0_i32_0 = arith.constant 0 : i32
    %c0_i32_1 = arith.constant 0 : i32
    return %c0_i32, %c0_i32_0 : i32, i32
  }
  func.func @transform_11(%arg0: i32) -> (i32, i32) {
    %c0_i32 = arith.constant 0 : i32
    %c0_i32_0 = arith.constant 0 : i32
    return %c0_i32, %arg0 : i32, i32
  }
}

module attributes {stable_mosaic.version = 11 : i64} {
  func.func @ncf_mlp_kernel(%arg0: i32, %arg1: memref<128x64xbf16, #tpu.memory_space<vmem>>, %arg2: memref<128x64xbf16, #tpu.memory_space<vmem>>, %arg3: memref<64x64xbf16, #tpu.memory_space<vmem>>, %arg4: memref<64x64xbf16, #tpu.memory_space<vmem>>, %arg5: memref<1x64xf32, #tpu.memory_space<vmem>>, %arg6: memref<64x32xbf16, #tpu.memory_space<vmem>>, %arg7: memref<1x32xf32, #tpu.memory_space<vmem>>, %arg8: memref<32x8xbf16, #tpu.memory_space<vmem>>, %arg9: memref<1x8xf32, #tpu.memory_space<vmem>>, %arg10: memref<1x8xbf16, #tpu.memory_space<vmem>>, %arg11: memref<1x1xf32, #tpu.memory_space<smem>>, %arg12: memref<1x128xf32, #tpu.memory_space<vmem>>) attributes {dimension_semantics = [#tpu.dimension_semantics<parallel>], iteration_bounds = array<i64: 1>, scalar_prefetch = 0 : i64, scratch_operands = 0 : i64, tpu.core_type = #tpu.core_type<tc>, window_params = [{transform_indices = @transform_0, window_bounds = array<i64: 128, 64>}, {transform_indices = @transform_1, window_bounds = array<i64: 128, 64>}, {pipeline_mode = #tpu.pipeline_mode<synchronous>, transform_indices = @transform_2, window_bounds = array<i64: 64, 64>}, {pipeline_mode = #tpu.pipeline_mode<synchronous>, transform_indices = @transform_3, window_bounds = array<i64: 64, 64>}, {pipeline_mode = #tpu.pipeline_mode<synchronous>, transform_indices = @transform_4, window_bounds = array<i64: 1, 64>}, {pipeline_mode = #tpu.pipeline_mode<synchronous>, transform_indices = @transform_5, window_bounds = array<i64: 64, 32>}, {pipeline_mode = #tpu.pipeline_mode<synchronous>, transform_indices = @transform_6, window_bounds = array<i64: 1, 32>}, {pipeline_mode = #tpu.pipeline_mode<synchronous>, transform_indices = @transform_7, window_bounds = array<i64: 32, 8>}, {pipeline_mode = #tpu.pipeline_mode<synchronous>, transform_indices = @transform_8, window_bounds = array<i64: 1, 8>}, {pipeline_mode = #tpu.pipeline_mode<synchronous>, transform_indices = @transform_9, window_bounds = array<i64: 1, 8>}, {transform_indices = @transform_10, window_bounds = array<i64: 1, 1>}, {transform_indices = @transform_11, window_bounds = array<i64: 1, 128>}]} {
    %c0 = arith.constant 0 : index
    %c0_0 = arith.constant 0 : index
    %0 = vector.load %arg1[%c0, %c0_0] : memref<128x64xbf16, #tpu.memory_space<vmem>>, vector<128x64xbf16>
    %c0_1 = arith.constant 0 : index
    %c0_2 = arith.constant 0 : index
    %1 = vector.load %arg3[%c0_1, %c0_2] : memref<64x64xbf16, #tpu.memory_space<vmem>>, vector<64x64xbf16>
    %cst = arith.constant dense<0.000000e+00> : vector<128x64xf32>
    %2 = tpu.matmul %0, %1, %cst {dimension_numbers = #tpu.dot_dimension_numbers<[1], [0], [0], [1], [0, 0, 1, 1], [], []>} : vector<128x64xbf16>, vector<64x64xbf16>, vector<128x64xf32> -> vector<128x64xf32>
    %c0_3 = arith.constant 0 : index
    %c0_4 = arith.constant 0 : index
    %3 = vector.load %arg2[%c0_3, %c0_4] : memref<128x64xbf16, #tpu.memory_space<vmem>>, vector<128x64xbf16>
    %c0_5 = arith.constant 0 : index
    %c0_6 = arith.constant 0 : index
    %4 = vector.load %arg4[%c0_5, %c0_6] : memref<64x64xbf16, #tpu.memory_space<vmem>>, vector<64x64xbf16>
    %cst_7 = arith.constant dense<0.000000e+00> : vector<128x64xf32>
    %5 = tpu.matmul %3, %4, %cst_7 {dimension_numbers = #tpu.dot_dimension_numbers<[1], [0], [0], [1], [0, 0, 1, 1], [], []>} : vector<128x64xbf16>, vector<64x64xbf16>, vector<128x64xf32> -> vector<128x64xf32>
    %6 = arith.addf %2, %5 : vector<128x64xf32>
    %c0_8 = arith.constant 0 : index
    %c0_9 = arith.constant 0 : index
    %7 = vector.load %arg5[%c0_8, %c0_9] : memref<1x64xf32, #tpu.memory_space<vmem>>, vector<1x64xf32>
    %8 = vector.broadcast %7 : vector<1x64xf32> to vector<128x64xf32>
    %9 = arith.addf %6, %8 : vector<128x64xf32>
    %cst_10 = arith.constant 0.000000e+00 : f32
    %10 = vector.broadcast %cst_10 : f32 to vector<128x64xf32>
    %11 = arith.maximumf %9, %10 : vector<128x64xf32>
    %12 = arith.truncf %11 : vector<128x64xf32> to vector<128x64xbf16>
    %c0_11 = arith.constant 0 : index
    %c0_12 = arith.constant 0 : index
    %13 = vector.load %arg6[%c0_11, %c0_12] : memref<64x32xbf16, #tpu.memory_space<vmem>>, vector<64x32xbf16>
    %cst_13 = arith.constant dense<0.000000e+00> : vector<128x32xf32>
    %14 = tpu.matmul %12, %13, %cst_13 {dimension_numbers = #tpu.dot_dimension_numbers<[1], [0], [0], [1], [0, 0, 1, 1], [], []>} : vector<128x64xbf16>, vector<64x32xbf16>, vector<128x32xf32> -> vector<128x32xf32>
    %c0_14 = arith.constant 0 : index
    %c0_15 = arith.constant 0 : index
    %15 = vector.load %arg7[%c0_14, %c0_15] : memref<1x32xf32, #tpu.memory_space<vmem>>, vector<1x32xf32>
    %16 = vector.broadcast %15 : vector<1x32xf32> to vector<128x32xf32>
    %17 = arith.addf %14, %16 : vector<128x32xf32>
    %cst_16 = arith.constant 0.000000e+00 : f32
    %18 = vector.broadcast %cst_16 : f32 to vector<128x32xf32>
    %19 = arith.maximumf %17, %18 : vector<128x32xf32>
    %20 = arith.truncf %19 : vector<128x32xf32> to vector<128x32xbf16>
    %c0_17 = arith.constant 0 : index
    %c0_18 = arith.constant 0 : index
    %21 = vector.load %arg8[%c0_17, %c0_18] : memref<32x8xbf16, #tpu.memory_space<vmem>>, vector<32x8xbf16>
    %cst_19 = arith.constant dense<0.000000e+00> : vector<128x8xf32>
    %22 = tpu.matmul %20, %21, %cst_19 {dimension_numbers = #tpu.dot_dimension_numbers<[1], [0], [0], [1], [0, 0, 1, 1], [], []>} : vector<128x32xbf16>, vector<32x8xbf16>, vector<128x8xf32> -> vector<128x8xf32>
    %c0_20 = arith.constant 0 : index
    %c0_21 = arith.constant 0 : index
    %23 = vector.load %arg9[%c0_20, %c0_21] : memref<1x8xf32, #tpu.memory_space<vmem>>, vector<1x8xf32>
    %24 = vector.broadcast %23 : vector<1x8xf32> to vector<128x8xf32>
    %25 = arith.addf %22, %24 : vector<128x8xf32>
    %cst_22 = arith.constant 0.000000e+00 : f32
    %26 = vector.broadcast %cst_22 : f32 to vector<128x8xf32>
    %27 = arith.maximumf %25, %26 : vector<128x8xf32>
    %28 = arith.truncf %27 : vector<128x8xf32> to vector<128x8xbf16>
    %c0_23 = arith.constant 0 : index
    %c0_24 = arith.constant 0 : index
    %29 = vector.load %arg10[%c0_23, %c0_24] : memref<1x8xbf16, #tpu.memory_space<vmem>>, vector<1x8xbf16>
    %cst_25 = arith.constant dense<0.000000e+00> : vector<1x128xf32>
    %30 = tpu.matmul %29, %28, %cst_25 {dimension_numbers = #tpu.dot_dimension_numbers<[1], [1], [0], [0], [0, 0, 1, 0], [], []>} : vector<1x8xbf16>, vector<128x8xbf16>, vector<1x128xf32> -> vector<1x128xf32>
    %c0_26 = arith.constant 0 : index
    %c0_27 = arith.constant 0 : index
    %31 = memref.load %arg11[%c0_26, %c0_27] : memref<1x1xf32, #tpu.memory_space<smem>>
    %32 = vector.broadcast %31 : f32 to vector<1x128xf32>
    %33 = arith.addf %30, %32 : vector<1x128xf32>
    %c0_28 = arith.constant 0 : index
    %c0_29 = arith.constant 0 : index
    %34 = vector.load %arg12[%c0_28, %c0_29] : memref<1x128xf32, #tpu.memory_space<vmem>>, vector<1x128xf32>
    tpu.vector_store %arg12[%c0_28, %c0_29], %33 {strides = array<i32>} : memref<1x128xf32, #tpu.memory_space<vmem>>, vector<1x128xf32>,
    return
  }
  func.func @transform_0(%arg0: i32) -> (i32, i32) {
    %c0_i32 = arith.constant 0 : i32
    %c0_i32_0 = arith.constant 0 : i32
    return %arg0, %c0_i32 : i32, i32
  }
  func.func @transform_1(%arg0: i32) -> (i32, i32) {
    %c0_i32 = arith.constant 0 : i32
    %c0_i32_0 = arith.constant 0 : i32
    return %arg0, %c0_i32 : i32, i32
  }
  func.func @transform_2(%arg0: i32) -> (i32, i32) {
    %c0_i32 = arith.constant 0 : i32
    %c0_i32_0 = arith.constant 0 : i32
    %c0_i32_1 = arith.constant 0 : i32
    return %c0_i32, %c0_i32_0 : i32, i32
  }
  func.func @transform_3(%arg0: i32) -> (i32, i32) {
    %c0_i32 = arith.constant 0 : i32
    %c0_i32_0 = arith.constant 0 : i32
    %c0_i32_1 = arith.constant 0 : i32
    return %c0_i32, %c0_i32_0 : i32, i32
  }
  func.func @transform_4(%arg0: i32) -> (i32, i32) {
    %c0_i32 = arith.constant 0 : i32
    %c0_i32_0 = arith.constant 0 : i32
    %c0_i32_1 = arith.constant 0 : i32
    return %c0_i32, %c0_i32_0 : i32, i32
  }
  func.func @transform_5(%arg0: i32) -> (i32, i32) {
    %c0_i32 = arith.constant 0 : i32
    %c0_i32_0 = arith.constant 0 : i32
    %c0_i32_1 = arith.constant 0 : i32
    return %c0_i32, %c0_i32_0 : i32, i32
  }
  func.func @transform_6(%arg0: i32) -> (i32, i32) {
    %c0_i32 = arith.constant 0 : i32
    %c0_i32_0 = arith.constant 0 : i32
    %c0_i32_1 = arith.constant 0 : i32
    return %c0_i32, %c0_i32_0 : i32, i32
  }
  func.func @transform_7(%arg0: i32) -> (i32, i32) {
    %c0_i32 = arith.constant 0 : i32
    %c0_i32_0 = arith.constant 0 : i32
    %c0_i32_1 = arith.constant 0 : i32
    return %c0_i32, %c0_i32_0 : i32, i32
  }
  func.func @transform_8(%arg0: i32) -> (i32, i32) {
    %c0_i32 = arith.constant 0 : i32
    %c0_i32_0 = arith.constant 0 : i32
    %c0_i32_1 = arith.constant 0 : i32
    return %c0_i32, %c0_i32_0 : i32, i32
  }
  func.func @transform_9(%arg0: i32) -> (i32, i32) {
    %c0_i32 = arith.constant 0 : i32
    %c0_i32_0 = arith.constant 0 : i32
    %c0_i32_1 = arith.constant 0 : i32
    return %c0_i32, %c0_i32_0 : i32, i32
  }
  func.func @transform_10(%arg0: i32) -> (i32, i32) {
    %c0_i32 = arith.constant 0 : i32
    %c0_i32_0 = arith.constant 0 : i32
    %c0_i32_1 = arith.constant 0 : i32
    return %c0_i32, %c0_i32_0 : i32, i32
  }
  func.func @transform_11(%arg0: i32) -> (i32, i32) {
    %c0_i32 = arith.constant 0 : i32
    %c0_i32_0 = arith.constant 0 : i32
    return %c0_i32, %arg0 : i32, i32
  }
}

</mosaic_0001>

<llo_original>
// kernel: ncf_forward.2
$region0: #{ncf_forward.2}
  #allocation0 [shape = 'u32[]', space=smem, size = 0x4, offset = 0x4, fixed_abs, tag = 'smem constant byte address 0x4 - core index']
  #allocation1 [shape = 'u32[144,128]{1,0:T(1,128)}', space=vmem, size = 0x12000, scoped, tag = 'internal scratch']
  #allocation2 [shape = 'f32[1,1]{1,0:T(1,128)S(6)}', space=smem, size = 0x200, scoped, tag = 'scoped memory for ncf_forward.2']
  %s0 = inlined_call_operand.vmem [shape: bf16[128,64], index: 0, kind: input, shape index: {}]
  %s1 = inlined_call_operand.vmem [shape: bf16[64,64], index: 1, kind: input, shape index: {}]
  %s2 = inlined_call_operand.vmem [shape: bf16[64,64], index: 2, kind: input, shape index: {}]
  %s3 = inlined_call_operand.vmem [shape: f32[1,64], index: 3, kind: input, shape index: {}]
  %s4 = inlined_call_operand.vmem [shape: bf16[64,32], index: 4, kind: input, shape index: {}]
  %s5 = inlined_call_operand.vmem [shape: f32[1,32], index: 5, kind: input, shape index: {}]
  %s6 = inlined_call_operand.vmem [shape: bf16[32,8], index: 6, kind: input, shape index: {}]
  %s7 = inlined_call_operand.vmem [shape: f32[1,8], index: 7, kind: input, shape index: {}]
  %s8 = inlined_call_operand.vmem [shape: bf16[1,8], index: 8, kind: input, shape index: {}]
  %s9 = inlined_call_operand.<no memory space> [shape: f32[1,1], index: 9, kind: input, shape index: {}]
  %s10 = inlined_call_operand.vmem [shape: bf16[128,64], index: 10, kind: input, shape index: {}]
  %s11 = inlined_call_operand.vmem [shape: pred[128], index: 11, kind: input, shape index: {}]
  %s12 = inlined_call_operand.<no memory space> [shape: bf16[], index: 12, kind: input, shape index: {}]
  %s13 = inlined_call_operand.vmem [shape: f32[1,128], index: 13, kind: output, shape index: {}]
  %s14 = sld [smem:[#allocation0]]
  $region58: #{ncf_forward.2} parent=0
    _
  %s16 = ssub.s32 1, %s14
  %s17 = scalar_select 0, %s16, %s14
  %v18 = vstv %s12
  %v19 = vunpack.i.l.bf16 %v18
  %v21 = vunpack.i.h.bf16 %v18
  %23 = sst [smem:[#allocation2]] %s9
  $region1: #{ncf_forward.2} parent=0
    #allocation3 [shape = 'u8[32768]{0}', space=vmem, size = 0x8000, dematerialized = true, scoped, tag = 'FusionAdapter Buffer %fusion.1 = bf16[128,64]{1,0:T(8,128)(2,1)} fusion(%param_10.2, %param_11.2, %param_12.2), kind=kLoop, calls=%fused_computation.3.clone, metadata={op_name="jit(ncf_forward)/jit(_take)/select_n" stack_frame_id=4}']
    // Predicated region
    $region2: #{ncf_forward.2} parent=1 // pred_check
      _
    $region3: #{ncf_forward.2} parent=1 // pred_check_branch
      %25 = sbr.rel (0) target = $region5
    $region4: #{ncf_forward.2} parent=1 // pred_region
      _
    $region5: #{ncf_forward.2} parent=1 // pred_fallthru
      _
    // Predicated region
    $region6: #{ncf_forward.2} parent=1 // pred_check
      _
    $region7: #{ncf_forward.2} parent=1 // pred_check_branch
      %27 = sbr.rel (0) target = $region9
    $region8: #{ncf_forward.2} parent=1 // pred_region
      _
    $region9: #{ncf_forward.2} parent=1 // pred_fallthru
      _
    // Predicated region
    $region10: #{ncf_forward.2} parent=1 // pred_check
      _
    $region11: #{ncf_forward.2} parent=1 // pred_check_branch
      %29 = sbr.rel (0) target = $region13
    $region12: #{ncf_forward.2} parent=1 // pred_region
      _
    $region13: #{ncf_forward.2} parent=1 // pred_fallthru
      _
    // Predicated region
    $region14: #{ncf_forward.2} parent=1 // pred_check
      _
    $region15: #{ncf_forward.2} parent=1 // pred_check_branch
      %31 = sbr.rel (0) target = $region17
    $region16: #{ncf_forward.2} parent=1 // pred_region
      _
    $region17: #{ncf_forward.2} parent=1 // pred_fallthru
      _
    // Predicated region
    $region18: #{ncf_forward.2} parent=1 // pred_check
      _
    $region19: #{ncf_forward.2} parent=1 // pred_check_branch
      %33 = sbr.rel (0) target = $region21
    $region20: #{ncf_forward.2} parent=1 // pred_region
      _
    $region21: #{ncf_forward.2} parent=1 // pred_fallthru
      _
    // Predicated region
    $region22: #{ncf_forward.2} parent=1 // pred_check
      _
    $region23: #{ncf_forward.2} parent=1 // pred_check_branch
      %35 = sbr.rel (0) target = $region25
    $region24: #{ncf_forward.2} parent=1 // pred_region
      _
    $region25: #{ncf_forward.2} parent=1 // pred_fallthru
      _
    // Predicated region
    $region26: #{ncf_forward.2} parent=1 // pred_check
      _
    $region27: #{ncf_forward.2} parent=1 // pred_check_branch
      %37 = sbr.rel (0) target = $region29
    $region28: #{ncf_forward.2} parent=1 // pred_region
      _
    $region29: #{ncf_forward.2} parent=1 // pred_fallthru
      _
    // Predicated region
    $region30: #{ncf_forward.2} parent=1 // pred_check
      _
    $region31: #{ncf_forward.2} parent=1 // pred_check_branch
      %39 = sbr.rel (0) target = $region33
    $region32: #{ncf_forward.2} parent=1 // pred_region
      _
    $region33: #{ncf_forward.2} parent=1 // pred_fallthru
      _
    // Predicated region
    $region34: #{ncf_forward.2} parent=1 // pred_check
      _
    $region35: #{ncf_forward.2} parent=1 // pred_check_branch
      %41 = sbr.rel (0) target = $region37
    $region36: #{ncf_forward.2} parent=1 // pred_region
      _
    $region37: #{ncf_forward.2} parent=1 // pred_fallthru
      _
    // Predicated region
    $region38: #{ncf_forward.2} parent=1 // pred_check
      _
    $region39: #{ncf_forward.2} parent=1 // pred_check_branch
      %43 = sbr.rel (0) target = $region41
    $region40: #{ncf_forward.2} parent=1 // pred_region
      _
    $region41: #{ncf_forward.2} parent=1 // pred_fallthru
      _
    // Predicated region
    $region42: #{ncf_forward.2} parent=1 // pred_check
      _
    $region43: #{ncf_forward.2} parent=1 // pred_check_branch
      %45 = sbr.rel (0) target = $region45
    $region44: #{ncf_forward.2} parent=1 // pred_region
      _
    $region45: #{ncf_forward.2} parent=1 // pred_fallthru
      _
    // Predicated region
    $region46: #{ncf_forward.2} parent=1 // pred_check
      _
    $region47: #{ncf_forward.2} parent=1 // pred_check_branch
      %47 = sbr.rel (0) target = $region49
    $region48: #{ncf_forward.2} parent=1 // pred_region
      _
    $region49: #{ncf_forward.2} parent=1 // pred_fallthru
      _
    %v48 = vld [vmem:[%s10] sm:$0xf]
    %v49 = vunpack.c.l.bf16 %v48
    %v50 = vunpack.c.h.bf16 %v48
    %v51 = vld [vmem:[%s11] ss:$0 sm:$0xff]
    %v53 = vshra.s32 %v51, 0
    %v54 = vand.u32 %v53, 255
    %56 = vbcast.lane.b32.xlu0 %v54, 256
    %v57 = vpop.permute.xlu0 %56
    %58 = xla_tuple %v57, %v49, %v19
    %59 = xla_tuple %58
    %vm60 = vcmp.ne.s32.totalorder %v57, 0
    %v61 = vsel %vm60, %v49, %v19
    %62 = xla_tuple %v61
    %v63 = vpack.c.bf16 0.0, %v61
    %s65 = ssub.s32 16, 1
    %66 = vst [vmem:[#allocation3] sm:%s65] %v63
    %s67 = scalar_lea.vmem %s10, 4
    %v68 = vld [vmem:[%s67] sm:$0xf]
    %v69 = vunpack.c.l.bf16 %v68
    %v70 = vunpack.c.h.bf16 %v68
    %v71 = vld [vmem:[%s11] ss:$0 sm:$0xff]
    %v73 = vshra.s32 %v71, 0
    %v74 = vand.u32 %v73, 255
    %s76 = sor.u32 256, 8
    %77 = vbcast.lane.b32.xlu0 %v74, %s76
    %v78 = vpop.permute.xlu0 %77
    %79 = xla_tuple %v78, %v69, %v19
    %80 = xla_tuple %79
    %vm81 = vcmp.ne.s32.totalorder %v78, 0
    %v82 = vsel %vm81, %v69, %v19
    %83 = xla_tuple %v82
    %s84 = scalar_lea.vmem [#allocation3], 4
    %v85 = vpack.c.bf16 0.0, %v82
    %s87 = ssub.s32 16, 1
    %88 = vst [vmem:[%s84] sm:%s87] %v85
    %s89 = scalar_lea.vmem %s10, 8
    %v90 = vld [vmem:[%s89] sm:$0xf]
    %v91 = vunpack.c.l.bf16 %v90
    %v92 = vunpack.c.h.bf16 %v90
    %v93 = vld [vmem:[%s11] ss:$0 sm:$0xff]
    %v95 = vshra.s32 %v93, 0
    %v96 = vand.u32 %v95, 255
    %s98 = sor.u32 256, 16
    %99 = vbcast.lane.b32.xlu0 %v96, %s98
    %v100 = vpop.permute.xlu0 %99
    %101 = xla_tuple %v100, %v91, %v19
    %102 = xla_tuple %101
    %vm103 = vcmp.ne.s32.totalorder %v100, 0
    %v104 = vsel %vm103, %v91, %v19
    %105 = xla_tuple %v104
    %s106 = scalar_lea.vmem [#allocation3], 8
    %v107 = vpack.c.bf16 0.0, %v104
    %s109 = ssub.s32 16, 1
    %110 = vst [vmem:[%s106] sm:%s109] %v107
    %s111 = scalar_lea.vmem %s10, 12
    %v112 = vld [vmem:[%s111] sm:$0xf]
    %v113 = vunpack.c.l.bf16 %v112
    %v114 = vunpack.c.h.bf16 %v112
    %v115 = vld [vmem:[%s11] ss:$0 sm:$0xff]
    %v117 = vshra.s32 %v115, 0
    %v118 = vand.u32 %v117, 255
    %s120 = sor.u32 256, 24
    %121 = vbcast.lane.b32.xlu0 %v118, %s120
    %v122 = vpop.permute.xlu0 %121
    %123 = xla_tuple %v122, %v113, %v19
    %124 = xla_tuple %123
    %vm125 = vcmp.ne.s32.totalorder %v122, 0
    %v126 = vsel %vm125, %v113, %v19
    %127 = xla_tuple %v126
    %s128 = scalar_lea.vmem [#allocation3], 12
    %v129 = vpack.c.bf16 0.0, %v126
    %s131 = ssub.s32 16, 1
    %132 = vst [vmem:[%s128] sm:%s131] %v129
    %s133 = scalar_lea.vmem %s10, 16
    %v134 = vld [vmem:[%s133] sm:$0xf]
    %v135 = vunpack.c.l.bf16 %v134
    %v136 = vunpack.c.h.bf16 %v134
    %v137 = vld [vmem:[%s11] ss:$0 sm:$0xff]
    %v139 = vshra.s32 %v137, 0
    %v140 = vand.u32 %v139, 255
    %s142 = sor.u32 256, 32
    %143 = vbcast.lane.b32.xlu0 %v140, %s142
    %v144 = vpop.permute.xlu0 %143
    %145 = xla_tuple %v144, %v135, %v19
    %146 = xla_tuple %145
    %vm147 = vcmp.ne.s32.totalorder %v144, 0
    %v148 = vsel %vm147, %v135, %v19
    %149 = xla_tuple %v148
    %s150 = scalar_lea.vmem [#allocation3], 16
    %v151 = vpack.c.bf16 0.0, %v148
    %s153 = ssub.s32 16, 1
    %154 = vst [vmem:[%s150] sm:%s153] %v151
    %s155 = scalar_lea.vmem %s10, 20
    %v156 = vld [vmem:[%s155] sm:$0xf]
    %v157 = vunpack.c.l.bf16 %v156
    %v158 = vunpack.c.h.bf16 %v156
    %v159 = vld [vmem:[%s11] ss:$0 sm:$0xff]
    %v161 = vshra.s32 %v159, 0
    %v162 = vand.u32 %v161, 255
    %s164 = sor.u32 256, 40
    %165 = vbcast.lane.b32.xlu0 %v162, %s164
    %v166 = vpop.permute.xlu0 %165
    %167 = xla_tuple %v166, %v157, %v19
    %168 = xla_tuple %167
    %vm169 = vcmp.ne.s32.totalorder %v166, 0
    %v170 = vsel %vm169, %v157, %v19
    %171 = xla_tuple %v170
    %s172 = scalar_lea.vmem [#allocation3], 20
    %v173 = vpack.c.bf16 0.0, %v170
    %s175 = ssub.s32 16, 1
    %176 = vst [vmem:[%s172] sm:%s175] %v173
    %s177 = scalar_lea.vmem %s10, 24
    %v178 = vld [vmem:[%s177] sm:$0xf]
    %v179 = vunpack.c.l.bf16 %v178
    %v180 = vunpack.c.h.bf16 %v178
    %v181 = vld [vmem:[%s11] ss:$0 sm:$0xff]
    %v183 = vshra.s32 %v181, 0
    %v184 = vand.u32 %v183, 255
    %s186 = sor.u32 256, 48
    %187 = vbcast.lane.b32.xlu0 %v184, %s186
    %v188 = vpop.permute.xlu0 %187
    %189 = xla_tuple %v188, %v179, %v19
    %190 = xla_tuple %189
    %vm191 = vcmp.ne.s32.totalorder %v188, 0
    %v192 = vsel %vm191, %v179, %v19
    %193 = xla_tuple %v192
    %s194 = scalar_lea.vmem [#allocation3], 24
    %v195 = vpack.c.bf16 0.0, %v192
    %s197 = ssub.s32 16, 1
    %198 = vst [vmem:[%s194] sm:%s197] %v195
    %s199 = scalar_lea.vmem %s10, 28
    %v200 = vld [vmem:[%s199] sm:$0xf]
    %v201 = vunpack.c.l.bf16 %v200
    %v202 = vunpack.c.h.bf16 %v200
    %v203 = vld [vmem:[%s11] ss:$0 sm:$0xff]
    %v205 = vshra.s32 %v203, 0
    %v206 = vand.u32 %v205, 255
    %s208 = sor.u32 256, 56
    %209 = vbcast.lane.b32.xlu0 %v206, %s208
    %v210 = vpop.permute.xlu0 %209
    %211 = xla_tuple %v210, %v201, %v19
    %212 = xla_tuple %211
    %vm213 = vcmp.ne.s32.totalorder %v210, 0
    %v214 = vsel %vm213, %v201, %v19
    %215 = xla_tuple %v214
    %s216 = scalar_lea.vmem [#allocation3], 28
    %v217 = vpack.c.bf16 0.0, %v214
    %s219 = ssub.s32 16, 1
    %220 = vst [vmem:[%s216] sm:%s219] %v217
    %s221 = scalar_lea.vmem %s10, 32
    %v222 = vld [vmem:[%s221] sm:$0xf]
    %v223 = vunpack.c.l.bf16 %v222
    %v224 = vunpack.c.h.bf16 %v222
    %v225 = vld [vmem:[%s11] ss:$0 sm:$0xff]
    %v227 = vshra.s32 %v225, 0
    %v228 = vand.u32 %v227, 255
    %s230 = sor.u32 256, 64
    %231 = vbcast.lane.b32.xlu0 %v228, %s230
    %v232 = vpop.permute.xlu0 %231
    %233 = xla_tuple %v232, %v223, %v19
    %234 = xla_tuple %233
    %vm235 = vcmp.ne.s32.totalorder %v232, 0
    %v236 = vsel %vm235, %v223, %v19
    %237 = xla_tuple %v236
    %s238 = scalar_lea.vmem [#allocation3], 32
    %v239 = vpack.c.bf16 0.0, %v236
    %s241 = ssub.s32 16, 1
    %242 = vst [vmem:[%s238] sm:%s241] %v239
    %s243 = scalar_lea.vmem %s10, 36
    %v244 = vld [vmem:[%s243] sm:$0xf]
    %v245 = vunpack.c.l.bf16 %v244
    %v246 = vunpack.c.h.bf16 %v244
    %v247 = vld [vmem:[%s11] ss:$0 sm:$0xff]
    %v249 = vshra.s32 %v247, 0
    %v250 = vand.u32 %v249, 255
    %s252 = sor.u32 256, 72
    %253 = vbcast.lane.b32.xlu0 %v250, %s252
    %v254 = vpop.permute.xlu0 %253
    %255 = xla_tuple %v254, %v245, %v19
    %256 = xla_tuple %255
    %vm257 = vcmp.ne.s32.totalorder %v254, 0
    %v258 = vsel %vm257, %v245, %v19
    %259 = xla_tuple %v258
    %s260 = scalar_lea.vmem [#allocation3], 36
    %v261 = vpack.c.bf16 0.0, %v258
    %s263 = ssub.s32 16, 1
    %264 = vst [vmem:[%s260] sm:%s263] %v261
    %s265 = scalar_lea.vmem %s10, 40
    %v266 = vld [vmem:[%s265] sm:$0xf]
    %v267 = vunpack.c.l.bf16 %v266
    %v268 = vunpack.c.h.bf16 %v266
    %v269 = vld [vmem:[%s11] ss:$0 sm:$0xff]
    %v271 = vshra.s32 %v269, 0
    %v272 = vand.u32 %v271, 255
    %s274 = sor.u32 256, 80
    %275 = vbcast.lane.b32.xlu0 %v272, %s274
    %v276 = vpop.permute.xlu0 %275
    %277 = xla_tuple %v276, %v267, %v19
    %278 = xla_tuple %277
    %vm279 = vcmp.ne.s32.totalorder %v276, 0
    %v280 = vsel %vm279, %v267, %v19
    %281 = xla_tuple %v280
    %s282 = scalar_lea.vmem [#allocation3], 40
    %v283 = vpack.c.bf16 0.0, %v280
    %s285 = ssub.s32 16, 1
    %286 = vst [vmem:[%s282] sm:%s285] %v283
    %s287 = scalar_lea.vmem %s10, 44
    %v288 = vld [vmem:[%s287] sm:$0xf]
    %v289 = vunpack.c.l.bf16 %v288
    %v290 = vunpack.c.h.bf16 %v288
    %v291 = vld [vmem:[%s11] ss:$0 sm:$0xff]
    %v293 = vshra.s32 %v291, 0
    %v294 = vand.u32 %v293, 255
    %s296 = sor.u32 256, 88
    %297 = vbcast.lane.b32.xlu0 %v294, %s296
    %v298 = vpop.permute.xlu0 %297
    %299 = xla_tuple %v298, %v289, %v19
    %300 = xla_tuple %299
    %vm301 = vcmp.ne.s32.totalorder %v298, 0
    %v302 = vsel %vm301, %v289, %v19
    %303 = xla_tuple %v302
    %s304 = scalar_lea.vmem [#allocation3], 44
    %v305 = vpack.c.bf16 0.0, %v302
    %s307 = ssub.s32 16, 1
    %308 = vst [vmem:[%s304] sm:%s307] %v305
    %s309 = scalar_lea.vmem %s10, 48
    %v310 = vld [vmem:[%s309] sm:$0xf]
    %v311 = vunpack.c.l.bf16 %v310
    %v312 = vunpack.c.h.bf16 %v310
    %v313 = vld [vmem:[%s11] ss:$0 sm:$0xff]
    %v315 = vshra.s32 %v313, 0
    %v316 = vand.u32 %v315, 255
    %s318 = sor.u32 256, 96
    %319 = vbcast.lane.b32.xlu0 %v316, %s318
    %v320 = vpop.permute.xlu0 %319
    %321 = xla_tuple %v320, %v311, %v19
    %322 = xla_tuple %321
    %vm323 = vcmp.ne.s32.totalorder %v320, 0
    %v324 = vsel %vm323, %v311, %v19
    %325 = xla_tuple %v324
    %s326 = scalar_lea.vmem [#allocation3], 48
    %v327 = vpack.c.bf16 0.0, %v324
    %s329 = ssub.s32 16, 1
    %330 = vst [vmem:[%s326] sm:%s329] %v327
    %s331 = scalar_lea.vmem %s10, 52
    %v332 = vld [vmem:[%s331] sm:$0xf]
    %v333 = vunpack.c.l.bf16 %v332
    %v334 = vunpack.c.h.bf16 %v332
    %v335 = vld [vmem:[%s11] ss:$0 sm:$0xff]
    %v337 = vshra.s32 %v335, 0
    %v338 = vand.u32 %v337, 255
    %s340 = sor.u32 256, 104
    %341 = vbcast.lane.b32.xlu0 %v338, %s340
    %v342 = vpop.permute.xlu0 %341
    %343 = xla_tuple %v342, %v333, %v19
    %344 = xla_tuple %343
    %vm345 = vcmp.ne.s32.totalorder %v342, 0
    %v346 = vsel %vm345, %v333, %v19
    %347 = xla_tuple %v346
    %s348 = scalar_lea.vmem [#allocation3], 52
    %v349 = vpack.c.bf16 0.0, %v346
    %s351 = ssub.s32 16, 1
    %352 = vst [vmem:[%s348] sm:%s351] %v349
    %s353 = scalar_lea.vmem %s10, 56
    %v354 = vld [vmem:[%s353] sm:$0xf]
    %v355 = vunpack.c.l.bf16 %v354
    %v356 = vunpack.c.h.bf16 %v354
    %v357 = vld [vmem:[%s11] ss:$0 sm:$0xff]
    %v359 = vshra.s32 %v357, 0
    %v360 = vand.u32 %v359, 255
    %s362 = sor.u32 256, 112
    %363 = vbcast.lane.b32.xlu0 %v360, %s362
    %v364 = vpop.permute.xlu0 %363
    %365 = xla_tuple %v364, %v355, %v19
    %366 = xla_tuple %365
    %vm367 = vcmp.ne.s32.totalorder %v364, 0
    %v368 = vsel %vm367, %v355, %v19
    %369 = xla_tuple %v368
    %s370 = scalar_lea.vmem [#allocation3], 56
    %v371 = vpack.c.bf16 0.0, %v368
    %s373 = ssub.s32 16, 1
    %374 = vst [vmem:[%s370] sm:%s373] %v371
    %s375 = scalar_lea.vmem %s10, 60
    %v376 = vld [vmem:[%s375] sm:$0xf]
    %v377 = vunpack.c.l.bf16 %v376
    %v378 = vunpack.c.h.bf16 %v376
    %v379 = vld [vmem:[%s11] ss:$0 sm:$0xff]
    %v381 = vshra.s32 %v379, 0
    %v382 = vand.u32 %v381, 255
    %s384 = sor.u32 256, 120
    %385 = vbcast.lane.b32.xlu0 %v382, %s384
    %v386 = vpop.permute.xlu0 %385
    %387 = xla_tuple %v386, %v377, %v19
    %388 = xla_tuple %387
    %vm389 = vcmp.ne.s32.totalorder %v386, 0
    %v390 = vsel %vm389, %v377, %v19
    %391 = xla_tuple %v390
    %s392 = scalar_lea.vmem [#allocation3], 60
    %v393 = vpack.c.bf16 0.0, %v390
    %s395 = ssub.s32 16, 1
    %396 = vst [vmem:[%s392] sm:%s395] %v393
    %v398 = vld [vmem:[%s0] sm:$0xf]
    %v399 = vld [vmem:[%s0 + $0x4] sm:$0xf]
    %v400 = vld [vmem:[%s0 + $0x8] sm:$0xf]
    %v401 = vld [vmem:[%s0 + $0xc] sm:$0xf]
    %v402 = vld [vmem:[%s0 + $0x10] sm:$0xf]
    %v403 = vld [vmem:[%s0 + $0x14] sm:$0xf]
    %v404 = vld [vmem:[%s0 + $0x18] sm:$0xf]
    %v405 = vld [vmem:[%s0 + $0x1c] sm:$0xf]
    %v406 = vld [vmem:[%s0 + $0x20] sm:$0xf]
    %v407 = vld [vmem:[%s0 + $0x24] sm:$0xf]
    %v408 = vld [vmem:[%s0 + $0x28] sm:$0xf]
    %v409 = vld [vmem:[%s0 + $0x2c] sm:$0xf]
    %v410 = vld [vmem:[%s0 + $0x30] sm:$0xf]
    %v411 = vld [vmem:[%s0 + $0x34] sm:$0xf]
    %v412 = vld [vmem:[%s0 + $0x38] sm:$0xf]
    %v413 = vld [vmem:[%s0 + $0x3c] sm:$0xf]
    %v414 = vld [vmem:[%s1] sm:$0xf]
    %v415 = vld [vmem:[%s1 + $0x4] sm:$0xf]
    %v416 = vld [vmem:[%s1 + $0x8] sm:$0xf]
    %v417 = vld [vmem:[%s1 + $0xc] sm:$0xf]
    %v418 = vld [vmem:[%s1 + $0x10] sm:$0xf]
    %v419 = vld [vmem:[%s1 + $0x14] sm:$0xf]
    %v420 = vld [vmem:[%s1 + $0x18] sm:$0xf]
    %v421 = vld [vmem:[%s1 + $0x1c] sm:$0xf]
    %v422 = vld [vmem:[#allocation3] sm:$0xf]
    %v423 = vld [vmem:[#allocation3 + $0x4] sm:$0xf]
    %v424 = vld [vmem:[#allocation3 + $0x8] sm:$0xf]
    %v425 = vld [vmem:[#allocation3 + $0xc] sm:$0xf]
    %v426 = vld [vmem:[#allocation3 + $0x10] sm:$0xf]
    %v427 = vld [vmem:[#allocation3 + $0x14] sm:$0xf]
    %v428 = vld [vmem:[#allocation3 + $0x18] sm:$0xf]
    %v429 = vld [vmem:[#allocation3 + $0x1c] sm:$0xf]
    %v430 = vld [vmem:[#allocation3 + $0x20] sm:$0xf]
    %v431 = vld [vmem:[#allocation3 + $0x24] sm:$0xf]
    %v432 = vld [vmem:[#allocation3 + $0x28] sm:$0xf]
    %v433 = vld [vmem:[#allocation3 + $0x2c] sm:$0xf]
    %v434 = vld [vmem:[#allocation3 + $0x30] sm:$0xf]
    %v435 = vld [vmem:[#allocation3 + $0x34] sm:$0xf]
    %v436 = vld [vmem:[#allocation3 + $0x38] sm:$0xf]
    %v437 = vld [vmem:[#allocation3 + $0x3c] sm:$0xf]
    %v438 = vld [vmem:[%s2] sm:$0xf]
    %v439 = vld [vmem:[%s2 + $0x4] sm:$0xf]
    %v440 = vld [vmem:[%s2 + $0x8] sm:$0xf]
    %v441 = vld [vmem:[%s2 + $0xc] sm:$0xf]
    %v442 = vld [vmem:[%s2 + $0x10] sm:$0xf]
    %v443 = vld [vmem:[%s2 + $0x14] sm:$0xf]
    %v444 = vld [vmem:[%s2 + $0x18] sm:$0xf]
    %v445 = vld [vmem:[%s2 + $0x1c] sm:$0xf]
    %v462 = vunpack.c.l.b16 %v422
    %v463 = vunpack.c.l.b16 %v423
    %v464 = vunpack.c.l.b16 %v424
    %v465 = vunpack.c.l.b16 %v425
    %v466 = vunpack.c.l.b16 %v426
    %v467 = vunpack.c.l.b16 %v427
    %v468 = vunpack.c.l.b16 %v428
    %v469 = vunpack.c.l.b16 %v429
    %v470 = vunpack.c.l.b16 %v430
    %v471 = vunpack.c.l.b16 %v431
    %v472 = vunpack.c.l.b16 %v432
    %v473 = vunpack.c.l.b16 %v433
    %v474 = vunpack.c.l.b16 %v434
    %v475 = vunpack.c.l.b16 %v435
    %v476 = vunpack.c.l.b16 %v436
    %v477 = vunpack.c.l.b16 %v437
    %v478 = vpack.c.b16 %v463, %v462
    %v479 = vpack.c.b16 %v465, %v464
    %v480 = vpack.c.b16 %v467, %v466
    %v481 = vpack.c.b16 %v469, %v468
    %v482 = vpack.c.b16 %v471, %v470
    %v483 = vpack.c.b16 %v473, %v472
    %v484 = vpack.c.b16 %v475, %v474
    %v485 = vpack.c.b16 %v477, %v476
    %v494 = vunpack.c.l.b16 %v438
    %v495 = vunpack.c.l.b16 %v439
    %v496 = vunpack.c.l.b16 %v440
    %v497 = vunpack.c.l.b16 %v441
    %v498 = vunpack.c.l.b16 %v442
    %v499 = vunpack.c.l.b16 %v443
    %v500 = vunpack.c.l.b16 %v444
    %v501 = vunpack.c.l.b16 %v445
    %v502 = vpack.c.b16 %v495, %v494
    %v503 = vpack.c.b16 %v497, %v496
    %v504 = vpack.c.b16 %v499, %v498
    %v505 = vpack.c.b16 %v501, %v500
    %vm510 = vcmask 523264
    %v512 = vsel %vm510, %v478, 0
    %v515 = vsel %vm510, %v479, 0
    %v518 = vsel %vm510, %v480, 0
    %v521 = vsel %vm510, %v481, 0
    %v524 = vsel %vm510, %v482, 0
    %v527 = vsel %vm510, %v483, 0
    %v530 = vsel %vm510, %v484, 0
    %v533 = vsel %vm510, %v485, 0
    %535 = vmatprep.subr.bf16.mxu0 0
    %536 = vmatpush1.bf16.msra.mxu0 0
    %537 = vmatprep.subr.bf16.mxu0 0
    %538 = vmatpush1.bf16.msra.mxu0 0
    %539 = vmatprep.subr.bf16.mxu0 0
    %540 = vmatpush1.bf16.msra.mxu0 0
    %541 = vmatprep.subr.bf16.mxu0 0
    %542 = vmatpush1.bf16.msra.mxu0 0
    %543 = vmatprep.subr.bf16.mxu0 0
    %544 = vmatpush1.bf16.msra.mxu0 %v505
    %545 = vmatprep.subr.bf16.mxu0 0
    %546 = vmatpush1.bf16.msra.mxu0 %v504
    %547 = vmatprep.subr.bf16.mxu0 0
    %548 = vmatpush1.bf16.msra.mxu0 %v503
    %549 = vmatprep.subr.bf16.mxu0 0
    %550 = vmatpush1.bf16.msra.mxu0 %v502
    %551 = vmatprep.subr.bf16.mxu0 0
    %552 = vmatpush2.bf16.msra.mxu0 0
    %553 = vmatprep.subr.bf16.mxu0 0
    %554 = vmatpush2.bf16.msra.mxu0 0
    %555 = vmatprep.subr.bf16.mxu0 0
    %556 = vmatpush2.bf16.msra.mxu0 0
    %557 = vmatprep.subr.bf16.mxu0 0
    %558 = vmatpush2.bf16.msra.mxu0 0
    %559 = vmatprep.subr.bf16.mxu0 0
    %560 = vmatpush2.bf16.msra.mxu0 0
    %561 = vmatprep.subr.bf16.mxu0 0
    %562 = vmatpush2.bf16.msra.mxu0 0
    %563 = vmatprep.subr.bf16.mxu0 0
    %564 = vmatpush2.bf16.msra.mxu0 0
    %565 = vmatprep.subr.bf16.mxu0 0
    %566 = vmatpush2.bf16.msra.mxu0 0
    %567 = vmatprep.mubr.bf16.mxu0 0
    %568 = vmatmul.mubr.bf16.gmra.mxu0 %v512
    %v569 = vpop.f32.mrf.mxu0
    %v570 = vadd.f32 0.0, %v569
    %v571 = vpop.f32.mrf.mxu0
    %v572 = vpop.f32.mrf.mxu0
    %v573 = vadd.f32 0.0, %v572
    %v574 = vpop.f32.mrf.mxu0
    %575 = vmatprep.mubr.bf16.mxu0 0
    %576 = vmatmul.mubr.bf16.gmra.mxu0 %v515
    %v577 = vpop.f32.mrf.mxu0
    %v578 = vadd.f32 0.0, %v577
    %v579 = vpop.f32.mrf.mxu0
    %v580 = vpop.f32.mrf.mxu0
    %v581 = vadd.f32 0.0, %v580
    %v582 = vpop.f32.mrf.mxu0
    %583 = vmatprep.mubr.bf16.mxu0 0
    %584 = vmatmul.mubr.bf16.gmra.mxu0 %v518
    %v585 = vpop.f32.mrf.mxu0
    %v586 = vadd.f32 0.0, %v585
    %v587 = vpop.f32.mrf.mxu0
    %v588 = vpop.f32.mrf.mxu0
    %v589 = vadd.f32 0.0, %v588
    %v590 = vpop.f32.mrf.mxu0
    %591 = vmatprep.mubr.bf16.mxu0 0
    %592 = vmatmul.mubr.bf16.gmra.mxu0 %v521
    %v593 = vpop.f32.mrf.mxu0
    %v594 = vadd.f32 0.0, %v593
    %v595 = vpop.f32.mrf.mxu0
    %v596 = vpop.f32.mrf.mxu0
    %v597 = vadd.f32 0.0, %v596
    %v598 = vpop.f32.mrf.mxu0
    %599 = vmatprep.mubr.bf16.mxu0 0
    %600 = vmatmul.mubr.bf16.gmra.mxu0 %v524
    %v601 = vpop.f32.mrf.mxu0
    %v602 = vadd.f32 0.0, %v601
    %v603 = vpop.f32.mrf.mxu0
    %v604 = vpop.f32.mrf.mxu0
    %v605 = vadd.f32 0.0, %v604
    %v606 = vpop.f32.mrf.mxu0
    %607 = vmatprep.mubr.bf16.mxu0 0
    %608 = vmatmul.mubr.bf16.gmra.mxu0 %v527
    %v609 = vpop.f32.mrf.mxu0
    %v610 = vadd.f32 0.0, %v609
    %v611 = vpop.f32.mrf.mxu0
    %v612 = vpop.f32.mrf.mxu0
    %v613 = vadd.f32 0.0, %v612
    %v614 = vpop.f32.mrf.mxu0
    %615 = vmatprep.mubr.bf16.mxu0 0
    %616 = vmatmul.mubr.bf16.gmra.mxu0 %v530
    %v617 = vpop.f32.mrf.mxu0
    %v618 = vadd.f32 0.0, %v617
    %v619 = vpop.f32.mrf.mxu0
    %v620 = vpop.f32.mrf.mxu0
    %v621 = vadd.f32 0.0, %v620
    %v622 = vpop.f32.mrf.mxu0
    %623 = vmatprep.mubr.bf16.mxu0 0
    %624 = vmatmul.mubr.bf16.gmra.mxu0 %v533
    %v625 = vpop.f32.mrf.mxu0
    %v626 = vadd.f32 0.0, %v625
    %v627 = vpop.f32.mrf.mxu0
    %v628 = vpop.f32.mrf.mxu0
    %v629 = vadd.f32 0.0, %v628
    %v630 = vpop.f32.mrf.mxu0
    %631 = vdwg.mxu0
    %v648 = vunpack.c.l.b16 %v398
    %v649 = vunpack.c.l.b16 %v399
    %v650 = vunpack.c.l.b16 %v400
    %v651 = vunpack.c.l.b16 %v401
    %v652 = vunpack.c.l.b16 %v402
    %v653 = vunpack.c.l.b16 %v403
    %v654 = vunpack.c.l.b16 %v404
    %v655 = vunpack.c.l.b16 %v405
    %v656 = vunpack.c.l.b16 %v406
    %v657 = vunpack.c.l.b16 %v407
    %v658 = vunpack.c.l.b16 %v408
    %v659 = vunpack.c.l.b16 %v409
    %v660 = vunpack.c.l.b16 %v410
    %v661 = vunpack.c.l.b16 %v411
    %v662 = vunpack.c.l.b16 %v412
    %v663 = vunpack.c.l.b16 %v413
    %v664 = vpack.c.b16 %v649, %v648
    %v665 = vpack.c.b16 %v651, %v650
    %v666 = vpack.c.b16 %v653, %v652
    %v667 = vpack.c.b16 %v655, %v654
    %v668 = vpack.c.b16 %v657, %v656
    %v669 = vpack.c.b16 %v659, %v658
    %v670 = vpack.c.b16 %v661, %v660
    %v671 = vpack.c.b16 %v663, %v662
    %v680 = vunpack.c.l.b16 %v414
    %v681 = vunpack.c.l.b16 %v415
    %v682 = vunpack.c.l.b16 %v416
    %v683 = vunpack.c.l.b16 %v417
    %v684 = vunpack.c.l.b16 %v418
    %v685 = vunpack.c.l.b16 %v419
    %v686 = vunpack.c.l.b16 %v420
    %v687 = vunpack.c.l.b16 %v421
    %v688 = vpack.c.b16 %v681, %v680
    %v689 = vpack.c.b16 %v683, %v682
    %v690 = vpack.c.b16 %v685, %v684
    %v691 = vpack.c.b16 %v687, %v686
    %v697 = vsel %vm510, %v664, 0
    %v700 = vsel %vm510, %v665, 0
    %v703 = vsel %vm510, %v666, 0
    %v706 = vsel %vm510, %v667, 0
    %v709 = vsel %vm510, %v668, 0
    %v712 = vsel %vm510, %v669, 0
    %v715 = vsel %vm510, %v670, 0
    %v718 = vsel %vm510, %v671, 0
    %720 = vmatprep.subr.bf16.mxu0 0
    %721 = vmatpush1.bf16.msra.mxu0 0
    %722 = vmatprep.subr.bf16.mxu0 0
    %723 = vmatpush1.bf16.msra.mxu0 0
    %724 = vmatprep.subr.bf16.mxu0 0
    %725 = vmatpush1.bf16.msra.mxu0 0
    %726 = vmatprep.subr.bf16.mxu0 0
    %727 = vmatpush1.bf16.msra.mxu0 0
    %728 = vmatprep.subr.bf16.mxu0 0
    %729 = vmatpush1.bf16.msra.mxu0 %v691
    %730 = vmatprep.subr.bf16.mxu0 0
    %731 = vmatpush1.bf16.msra.mxu0 %v690
    %732 = vmatprep.subr.bf16.mxu0 0
    %733 = vmatpush1.bf16.msra.mxu0 %v689
    %734 = vmatprep.subr.bf16.mxu0 0
    %735 = vmatpush1.bf16.msra.mxu0 %v688
    %736 = vmatprep.subr.bf16.mxu0 0
    %737 = vmatpush2.bf16.msra.mxu0 0
    %738 = vmatprep.subr.bf16.mxu0 0
    %739 = vmatpush2.bf16.msra.mxu0 0
    %740 = vmatprep.subr.bf16.mxu0 0
    %741 = vmatpush2.bf16.msra.mxu0 0
    %742 = vmatprep.subr.bf16.mxu0 0
    %743 = vmatpush2.bf16.msra.mxu0 0
    %744 = vmatprep.subr.bf16.mxu0 0
    %745 = vmatpush2.bf16.msra.mxu0 0
    %746 = vmatprep.subr.bf16.mxu0 0
    %747 = vmatpush2.bf16.msra.mxu0 0
    %748 = vmatprep.subr.bf16.mxu0 0
    %749 = vmatpush2.bf16.msra.mxu0 0
    %750 = vmatprep.subr.bf16.mxu0 0
    %751 = vmatpush2.bf16.msra.mxu0 0
    %752 = vmatprep.mubr.bf16.mxu0 0
    %753 = vmatmul.mubr.bf16.gmra.mxu0 %v697
    %v754 = vpop.f32.mrf.mxu0
    %v755 = vadd.f32 %v570, %v754
    %v756 = vpop.f32.mrf.mxu0
    %v757 = vpop.f32.mrf.mxu0
    %v758 = vadd.f32 %v573, %v757
    %v759 = vpop.f32.mrf.mxu0
    %760 = vmatprep.mubr.bf16.mxu0 0
    %761 = vmatmul.mubr.bf16.gmra.mxu0 %v700
    %v762 = vpop.f32.mrf.mxu0
    %v763 = vadd.f32 %v578, %v762
    %v764 = vpop.f32.mrf.mxu0
    %v765 = vpop.f32.mrf.mxu0
    %v766 = vadd.f32 %v581, %v765
    %v767 = vpop.f32.mrf.mxu0
    %768 = vmatprep.mubr.bf16.mxu0 0
    %769 = vmatmul.mubr.bf16.gmra.mxu0 %v703
    %v770 = vpop.f32.mrf.mxu0
    %v771 = vadd.f32 %v586, %v770
    %v772 = vpop.f32.mrf.mxu0
    %v773 = vpop.f32.mrf.mxu0
    %v774 = vadd.f32 %v589, %v773
    %v775 = vpop.f32.mrf.mxu0
    %776 = vmatprep.mubr.bf16.mxu0 0
    %777 = vmatmul.mubr.bf16.gmra.mxu0 %v706
    %v778 = vpop.f32.mrf.mxu0
    %v779 = vadd.f32 %v594, %v778
    %v780 = vpop.f32.mrf.mxu0
    %v781 = vpop.f32.mrf.mxu0
    %v782 = vadd.f32 %v597, %v781
    %v783 = vpop.f32.mrf.mxu0
    %784 = vmatprep.mubr.bf16.mxu0 0
    %785 = vmatmul.mubr.bf16.gmra.mxu0 %v709
    %v786 = vpop.f32.mrf.mxu0
    %v787 = vadd.f32 %v602, %v786
    %v788 = vpop.f32.mrf.mxu0
    %v789 = vpop.f32.mrf.mxu0
    %v790 = vadd.f32 %v605, %v789
    %v791 = vpop.f32.mrf.mxu0
    %792 = vmatprep.mubr.bf16.mxu0 0
    %793 = vmatmul.mubr.bf16.gmra.mxu0 %v712
    %v794 = vpop.f32.mrf.mxu0
    %v795 = vadd.f32 %v610, %v794
    %v796 = vpop.f32.mrf.mxu0
    %v797 = vpop.f32.mrf.mxu0
    %v798 = vadd.f32 %v613, %v797
    %v799 = vpop.f32.mrf.mxu0
    %800 = vmatprep.mubr.bf16.mxu0 0
    %801 = vmatmul.mubr.bf16.gmra.mxu0 %v715
    %v802 = vpop.f32.mrf.mxu0
    %v803 = vadd.f32 %v618, %v802
    %v804 = vpop.f32.mrf.mxu0
    %v805 = vpop.f32.mrf.mxu0
    %v806 = vadd.f32 %v621, %v805
    %v807 = vpop.f32.mrf.mxu0
    %808 = vmatprep.mubr.bf16.mxu0 0
    %809 = vmatmul.mubr.bf16.gmra.mxu0 %v718
    %v810 = vpop.f32.mrf.mxu0
    %v811 = vadd.f32 %v626, %v810
    %v812 = vpop.f32.mrf.mxu0
    %v813 = vpop.f32.mrf.mxu0
    %v814 = vadd.f32 %v629, %v813
    %v815 = vpop.f32.mrf.mxu0
    %816 = vdwg.mxu0
    %v817 = vld [vmem:[%s3] sm:$0x1]
    %v819 = vlaneseq
    %v820 = vshrl.u32 %v819, 7
    %v821 = vsub.s32 0, %v820
    %v822 = vrot.slane %v817, %v821
    %v824 = vadd.f32 %v755, %v822
    %v825 = vadd.f32 %v758, %v822
    %v826 = vadd.f32 %v763, %v822
    %v827 = vadd.f32 %v766, %v822
    %v828 = vadd.f32 %v771, %v822
    %v829 = vadd.f32 %v774, %v822
    %v830 = vadd.f32 %v779, %v822
    %v831 = vadd.f32 %v782, %v822
    %v832 = vadd.f32 %v787, %v822
    %v833 = vadd.f32 %v790, %v822
    %v834 = vadd.f32 %v795, %v822
    %v835 = vadd.f32 %v798, %v822
    %v836 = vadd.f32 %v803, %v822
    %v837 = vadd.f32 %v806, %v822
    %v838 = vadd.f32 %v811, %v822
    %v839 = vadd.f32 %v814, %v822
    %v840 = vmax.f32 %v824, 0.0
    %v841 = vmax.f32 %v825, 0.0
    %v842 = vmax.f32 %v826, 0.0
    %v843 = vmax.f32 %v827, 0.0
    %v844 = vmax.f32 %v828, 0.0
    %v845 = vmax.f32 %v829, 0.0
    %v846 = vmax.f32 %v830, 0.0
    %v847 = vmax.f32 %v831, 0.0
    %v848 = vmax.f32 %v832, 0.0
    %v849 = vmax.f32 %v833, 0.0
    %v850 = vmax.f32 %v834, 0.0
    %v851 = vmax.f32 %v835, 0.0
    %v852 = vmax.f32 %v836, 0.0
    %v853 = vmax.f32 %v837, 0.0
    %v854 = vmax.f32 %v838, 0.0
    %v855 = vmax.f32 %v839, 0.0
    %v856 = vpack.c.bf16 %v841, %v840
    %v857 = vpack.c.bf16 %v843, %v842
    %v858 = vpack.c.bf16 %v845, %v844
    %v859 = vpack.c.bf16 %v847, %v846
    %v860 = vpack.c.bf16 %v849, %v848
    %v861 = vpack.c.bf16 %v851, %v850
    %v862 = vpack.c.bf16 %v853, %v852
    %v863 = vpack.c.bf16 %v855, %v854
    %v864 = vld [vmem:[%s4] sm:$0xf]
    %v865 = vld [vmem:[%s4 + $0x4] sm:$0xf]
    %v866 = vld [vmem:[%s4 + $0x8] sm:$0xf]
    %v867 = vld [vmem:[%s4 + $0xc] sm:$0xf]
    %v868 = vld [vmem:[%s4 + $0x10] sm:$0xf]
    %v869 = vld [vmem:[%s4 + $0x14] sm:$0xf]
    %v870 = vld [vmem:[%s4 + $0x18] sm:$0xf]
    %v871 = vld [vmem:[%s4 + $0x1c] sm:$0xf]
    %v872 = vld [vmem:[%s5] sm:$0x1]
    %v874 = vlaneseq
    %v875 = vshrl.u32 %v874, 7
    %v876 = vsub.s32 0, %v875
    %v877 = vrot.slane %v872, %v876
    %v887 = vunpack.c.l.b16 %v864
    %v888 = vunpack.c.l.b16 %v865
    %v889 = vunpack.c.l.b16 %v866
    %v890 = vunpack.c.l.b16 %v867
    %v891 = vunpack.c.l.b16 %v868
    %v892 = vunpack.c.l.b16 %v869
    %v893 = vunpack.c.l.b16 %v870
    %v894 = vunpack.c.l.b16 %v871
    %v895 = vpack.c.b16 %v888, %v887
    %v896 = vpack.c.b16 %v890, %v889
    %v897 = vpack.c.b16 %v892, %v891
    %v898 = vpack.c.b16 %v894, %v893
    %v904 = vsel %vm510, %v856, 0
    %v907 = vsel %vm510, %v857, 0
    %v910 = vsel %vm510, %v858, 0
    %v913 = vsel %vm510, %v859, 0
    %v916 = vsel %vm510, %v860, 0
    %v919 = vsel %vm510, %v861, 0
    %v922 = vsel %vm510, %v862, 0
    %v925 = vsel %vm510, %v863, 0
    %927 = vmatprep.subr.bf16.mxu0 0
    %928 = vmatpush1.bf16.msra.mxu0 0
    %929 = vmatprep.subr.bf16.mxu0 0
    %930 = vmatpush1.bf16.msra.mxu0 0
    %931 = vmatprep.subr.bf16.mxu0 0
    %932 = vmatpush1.bf16.msra.mxu0 0
    %933 = vmatprep.subr.bf16.mxu0 0
    %934 = vmatpush1.bf16.msra.mxu0 0
    %935 = vmatprep.subr.bf16.mxu0 0
    %936 = vmatpush1.bf16.msra.mxu0 %v898
    %937 = vmatprep.subr.bf16.mxu0 0
    %938 = vmatpush1.bf16.msra.mxu0 %v897
    %939 = vmatprep.subr.bf16.mxu0 0
    %940 = vmatpush1.bf16.msra.mxu0 %v896
    %941 = vmatprep.subr.bf16.mxu0 0
    %942 = vmatpush1.bf16.msra.mxu0 %v895
    %943 = vmatprep.subr.bf16.mxu0 0
    %944 = vmatpush2.bf16.msra.mxu0 0
    %945 = vmatprep.subr.bf16.mxu0 0
    %946 = vmatpush2.bf16.msra.mxu0 0
    %947 = vmatprep.subr.bf16.mxu0 0
    %948 = vmatpush2.bf16.msra.mxu0 0
    %949 = vmatprep.subr.bf16.mxu0 0
    %950 = vmatpush2.bf16.msra.mxu0 0
    %951 = vmatprep.subr.bf16.mxu0 0
    %952 = vmatpush2.bf16.msra.mxu0 0
    %953 = vmatprep.subr.bf16.mxu0 0
    %954 = vmatpush2.bf16.msra.mxu0 0
    %955 = vmatprep.subr.bf16.mxu0 0
    %956 = vmatpush2.bf16.msra.mxu0 0
    %957 = vmatprep.subr.bf16.mxu0 0
    %958 = vmatpush2.bf16.msra.mxu0 0
    %959 = vmatprep.mubr.bf16.mxu0 0
    %960 = vmatmul.mubr.bf16.gmra.mxu0 %v904
    %v961 = vpop.f32.mrf.mxu0
    %v962 = vadd.f32 %v877, %v961
    %v963 = vpop.f32.mrf.mxu0
    %v964 = vpop.f32.mrf.mxu0
    %v965 = vadd.f32 %v877, %v964
    %v966 = vpop.f32.mrf.mxu0
    %967 = vmatprep.mubr.bf16.mxu0 0
    %968 = vmatmul.mubr.bf16.gmra.mxu0 %v907
    %v969 = vpop.f32.mrf.mxu0
    %v970 = vadd.f32 %v877, %v969
    %v971 = vpop.f32.mrf.mxu0
    %v972 = vpop.f32.mrf.mxu0
    %v973 = vadd.f32 %v877, %v972
    %v974 = vpop.f32.mrf.mxu0
    %975 = vmatprep.mubr.bf16.mxu0 0
    %976 = vmatmul.mubr.bf16.gmra.mxu0 %v910
    %v977 = vpop.f32.mrf.mxu0
    %v978 = vadd.f32 %v877, %v977
    %v979 = vpop.f32.mrf.mxu0
    %v980 = vpop.f32.mrf.mxu0
    %v981 = vadd.f32 %v877, %v980
    %v982 = vpop.f32.mrf.mxu0
    %983 = vmatprep.mubr.bf16.mxu0 0
    %984 = vmatmul.mubr.bf16.gmra.mxu0 %v913
    %v985 = vpop.f32.mrf.mxu0
    %v986 = vadd.f32 %v877, %v985
    %v987 = vpop.f32.mrf.mxu0
    %v988 = vpop.f32.mrf.mxu0
    %v989 = vadd.f32 %v877, %v988
    %v990 = vpop.f32.mrf.mxu0
    %991 = vmatprep.mubr.bf16.mxu0 0
    %992 = vmatmul.mubr.bf16.gmra.mxu0 %v916
    %v993 = vpop.f32.mrf.mxu0
    %v994 = vadd.f32 %v877, %v993
    %v995 = vpop.f32.mrf.mxu0
    %v996 = vpop.f32.mrf.mxu0
    %v997 = vadd.f32 %v877, %v996
    %v998 = vpop.f32.mrf.mxu0
    %999 = vmatprep.mubr.bf16.mxu0 0
    %1000 = vmatmul.mubr.bf16.gmra.mxu0 %v919
    %v1001 = vpop.f32.mrf.mxu0
    %v1002 = vadd.f32 %v877, %v1001
    %v1003 = vpop.f32.mrf.mxu0
    %v1004 = vpop.f32.mrf.mxu0
    %v1005 = vadd.f32 %v877, %v1004
    %v1006 = vpop.f32.mrf.mxu0
    %1007 = vmatprep.mubr.bf16.mxu0 0
    %1008 = vmatmul.mubr.bf16.gmra.mxu0 %v922
    %v1009 = vpop.f32.mrf.mxu0
    %v1010 = vadd.f32 %v877, %v1009
    %v1011 = vpop.f32.mrf.mxu0
    %v1012 = vpop.f32.mrf.mxu0
    %v1013 = vadd.f32 %v877, %v1012
    %v1014 = vpop.f32.mrf.mxu0
    %1015 = vmatprep.mubr.bf16.mxu0 0
    %1016 = vmatmul.mubr.bf16.gmra.mxu0 %v925
    %v1017 = vpop.f32.mrf.mxu0
    %v1018 = vadd.f32 %v877, %v1017
    %v1019 = vpop.f32.mrf.mxu0
    %v1020 = vpop.f32.mrf.mxu0
    %v1021 = vadd.f32 %v877, %v1020
    %v1022 = vpop.f32.mrf.mxu0
    %1023 = vdwg.mxu0
    %v1024 = vmax.f32 %v962, 0.0
    %v1025 = vmax.f32 %v965, 0.0
    %v1026 = vmax.f32 %v970, 0.0
    %v1027 = vmax.f32 %v973, 0.0
    %v1028 = vmax.f32 %v978, 0.0
    %v1029 = vmax.f32 %v981, 0.0
    %v1030 = vmax.f32 %v986, 0.0
    %v1031 = vmax.f32 %v989, 0.0
    %v1032 = vmax.f32 %v994, 0.0
    %v1033 = vmax.f32 %v997, 0.0
    %v1034 = vmax.f32 %v1002, 0.0
    %v1035 = vmax.f32 %v1005, 0.0
    %v1036 = vmax.f32 %v1010, 0.0
    %v1037 = vmax.f32 %v1013, 0.0
    %v1038 = vmax.f32 %v1018, 0.0
    %v1039 = vmax.f32 %v1021, 0.0
    %v1040 = vpack.c.bf16 %v1025, %v1024
    %v1041 = vpack.c.bf16 %v1027, %v1026
    %v1042 = vpack.c.bf16 %v1029, %v1028
    %v1043 = vpack.c.bf16 %v1031, %v1030
    %v1044 = vpack.c.bf16 %v1033, %v1032
    %v1045 = vpack.c.bf16 %v1035, %v1034
    %v1046 = vpack.c.bf16 %v1037, %v1036
    %v1047 = vpack.c.bf16 %v1039, %v1038
    %v1048 = vld [vmem:[%s6] sm:$0xf]
    %v1049 = vld [vmem:[%s6 + $0x4] sm:$0xf]
    %v1050 = vld [vmem:[%s6 + $0x8] sm:$0xf]
    %v1051 = vld [vmem:[%s6 + $0xc] sm:$0xf]
    %v1052 = vld [vmem:[%s7] sm:$0x1]
    %v1054 = vlaneseq
    %v1055 = vshrl.u32 %v1054, 7
    %v1056 = vsub.s32 0, %v1055
    %v1057 = vrot.slane %v1052, %v1056
    %v1063 = vunpack.c.l.b16 %v1048
    %v1064 = vunpack.c.l.b16 %v1049
    %v1065 = vunpack.c.l.b16 %v1050
    %v1066 = vunpack.c.l.b16 %v1051
    %v1067 = vpack.c.b16 %v1064, %v1063
    %v1068 = vpack.c.b16 %v1066, %v1065
    %vm1071 = vcmask 261120
    %v1073 = vsel %vm1071, %v1040, 0
    %v1076 = vsel %vm1071, %v1041, 0
    %v1079 = vsel %vm1071, %v1042, 0
    %v1082 = vsel %vm1071, %v1043, 0
    %v1085 = vsel %vm1071, %v1044, 0
    %v1088 = vsel %vm1071, %v1045, 0
    %v1091 = vsel %vm1071, %v1046, 0
    %v1094 = vsel %vm1071, %v1047, 0
    %1096 = vmatprep.subr.bf16.mxu0 0
    %1097 = vmatpush1.bf16.msra.mxu0 0
    %1098 = vmatprep.subr.bf16.mxu0 0
    %1099 = vmatpush1.bf16.msra.mxu0 0
    %1100 = vmatprep.subr.bf16.mxu0 0
    %1101 = vmatpush1.bf16.msra.mxu0 0
    %1102 = vmatprep.subr.bf16.mxu0 0
    %1103 = vmatpush1.bf16.msra.mxu0 0
    %1104 = vmatprep.subr.bf16.mxu0 0
    %1105 = vmatpush1.bf16.msra.mxu0 0
    %1106 = vmatprep.subr.bf16.mxu0 0
    %1107 = vmatpush1.bf16.msra.mxu0 0
    %1108 = vmatprep.subr.bf16.mxu0 0
    %1109 = vmatpush1.bf16.msra.mxu0 %v1068
    %1110 = vmatprep.subr.bf16.mxu0 0
    %1111 = vmatpush1.bf16.msra.mxu0 %v1067
    %1112 = vmatprep.subr.bf16.mxu0 0
    %1113 = vmatpush2.bf16.msra.mxu0 0
    %1114 = vmatprep.subr.bf16.mxu0 0
    %1115 = vmatpush2.bf16.msra.mxu0 0
    %1116 = vmatprep.subr.bf16.mxu0 0
    %1117 = vmatpush2.bf16.msra.mxu0 0
    %1118 = vmatprep.subr.bf16.mxu0 0
    %1119 = vmatpush2.bf16.msra.mxu0 0
    %1120 = vmatprep.subr.bf16.mxu0 0
    %1121 = vmatpush2.bf16.msra.mxu0 0
    %1122 = vmatprep.subr.bf16.mxu0 0
    %1123 = vmatpush2.bf16.msra.mxu0 0
    %1124 = vmatprep.subr.bf16.mxu0 0
    %1125 = vmatpush2.bf16.msra.mxu0 0
    %1126 = vmatprep.subr.bf16.mxu0 0
    %1127 = vmatpush2.bf16.msra.mxu0 0
    %1128 = vmatprep.mubr.bf16.mxu0 0
    %1129 = vmatmul.mubr.bf16.gmra.mxu0 %v1073
    %v1130 = vpop.f32.mrf.mxu0
    %v1131 = vadd.f32 %v1057, %v1130
    %v1132 = vpop.f32.mrf.mxu0
    %v1133 = vpop.f32.mrf.mxu0
    %v1134 = vadd.f32 %v1057, %v1133
    %v1135 = vpop.f32.mrf.mxu0
    %1136 = vmatprep.mubr.bf16.mxu0 0
    %1137 = vmatmul.mubr.bf16.gmra.mxu0 %v1076
    %v1138 = vpop.f32.mrf.mxu0
    %v1139 = vadd.f32 %v1057, %v1138
    %v1140 = vpop.f32.mrf.mxu0
    %v1141 = vpop.f32.mrf.mxu0
    %v1142 = vadd.f32 %v1057, %v1141
    %v1143 = vpop.f32.mrf.mxu0
    %1144 = vmatprep.mubr.bf16.mxu0 0
    %1145 = vmatmul.mubr.bf16.gmra.mxu0 %v1079
    %v1146 = vpop.f32.mrf.mxu0
    %v1147 = vadd.f32 %v1057, %v1146
    %v1148 = vpop.f32.mrf.mxu0
    %v1149 = vpop.f32.mrf.mxu0
    %v1150 = vadd.f32 %v1057, %v1149
    %v1151 = vpop.f32.mrf.mxu0
    %1152 = vmatprep.mubr.bf16.mxu0 0
    %1153 = vmatmul.mubr.bf16.gmra.mxu0 %v1082
    %v1154 = vpop.f32.mrf.mxu0
    %v1155 = vadd.f32 %v1057, %v1154
    %v1156 = vpop.f32.mrf.mxu0
    %v1157 = vpop.f32.mrf.mxu0
    %v1158 = vadd.f32 %v1057, %v1157
    %v1159 = vpop.f32.mrf.mxu0
    %1160 = vmatprep.mubr.bf16.mxu0 0
    %1161 = vmatmul.mubr.bf16.gmra.mxu0 %v1085
    %v1162 = vpop.f32.mrf.mxu0
    %v1163 = vadd.f32 %v1057, %v1162
    %v1164 = vpop.f32.mrf.mxu0
    %v1165 = vpop.f32.mrf.mxu0
    %v1166 = vadd.f32 %v1057, %v1165
    %v1167 = vpop.f32.mrf.mxu0
    %1168 = vmatprep.mubr.bf16.mxu0 0
    %1169 = vmatmul.mubr.bf16.gmra.mxu0 %v1088
    %v1170 = vpop.f32.mrf.mxu0
    %v1171 = vadd.f32 %v1057, %v1170
    %v1172 = vpop.f32.mrf.mxu0
    %v1173 = vpop.f32.mrf.mxu0
    %v1174 = vadd.f32 %v1057, %v1173
    %v1175 = vpop.f32.mrf.mxu0
    %1176 = vmatprep.mubr.bf16.mxu0 0
    %1177 = vmatmul.mubr.bf16.gmra.mxu0 %v1091
    %v1178 = vpop.f32.mrf.mxu0
    %v1179 = vadd.f32 %v1057, %v1178
    %v1180 = vpop.f32.mrf.mxu0
    %v1181 = vpop.f32.mrf.mxu0
    %v1182 = vadd.f32 %v1057, %v1181
    %v1183 = vpop.f32.mrf.mxu0
    %1184 = vmatprep.mubr.bf16.mxu0 0
    %1185 = vmatmul.mubr.bf16.gmra.mxu0 %v1094
    %v1186 = vpop.f32.mrf.mxu0
    %v1187 = vadd.f32 %v1057, %v1186
    %v1188 = vpop.f32.mrf.mxu0
    %v1189 = vpop.f32.mrf.mxu0
    %v1190 = vadd.f32 %v1057, %v1189
    %v1191 = vpop.f32.mrf.mxu0
    %1192 = vdwg.mxu0
    %v1193 = vmax.f32 %v1131, 0.0
    %v1194 = vmax.f32 %v1134, 0.0
    %v1195 = vmax.f32 %v1139, 0.0
    %v1196 = vmax.f32 %v1142, 0.0
    %v1197 = vmax.f32 %v1147, 0.0
    %v1198 = vmax.f32 %v1150, 0.0
    %v1199 = vmax.f32 %v1155, 0.0
    %v1200 = vmax.f32 %v1158, 0.0
    %v1201 = vmax.f32 %v1163, 0.0
    %v1202 = vmax.f32 %v1166, 0.0
    %v1203 = vmax.f32 %v1171, 0.0
    %v1204 = vmax.f32 %v1174, 0.0
    %v1205 = vmax.f32 %v1179, 0.0
    %v1206 = vmax.f32 %v1182, 0.0
    %v1207 = vmax.f32 %v1187, 0.0
    %v1208 = vmax.f32 %v1190, 0.0
    %v1209 = vpack.c.bf16 %v1194, %v1193
    %v1210 = vpack.c.bf16 %v1196, %v1195
    %v1211 = vpack.c.bf16 %v1198, %v1197
    %v1212 = vpack.c.bf16 %v1200, %v1199
    %v1213 = vpack.c.bf16 %v1202, %v1201
    %v1214 = vpack.c.bf16 %v1204, %v1203
    %v1215 = vpack.c.bf16 %v1206, %v1205
    %v1216 = vpack.c.bf16 %v1208, %v1207
    %v1217 = vld [vmem:[%s8] sm:$0x1]
    %s1218 = sld [smem:[#allocation2]]
    %v1219 = vstv %s1218
    %vm1220 = vcmask 64512
    %v1222 = vsel %vm1220, %v1217, 0
    %v1225 = vsel %vm1220, %v1209, 0
    %v1228 = vsel %vm1220, %v1210, 0
    %v1231 = vsel %vm1220, %v1211, 0
    %v1234 = vsel %vm1220, %v1212, 0
    %v1237 = vsel %vm1220, %v1213, 0
    %v1240 = vsel %vm1220, %v1214, 0
    %v1243 = vsel %vm1220, %v1215, 0
    %v1246 = vsel %vm1220, %v1216, 0
    %1248 = vmatprep.subr.bf16.mxu0 0
    %1249 = vmatpush1.bf16.xpose.msra.mxu0 %v1246
    %1250 = vmatprep.subr.bf16.mxu0 0
    %1251 = vmatpush1.bf16.xpose.msra.mxu0 %v1243
    %1252 = vmatprep.subr.bf16.mxu0 0
    %1253 = vmatpush1.bf16.xpose.msra.mxu0 %v1240
    %1254 = vmatprep.subr.bf16.mxu0 0
    %1255 = vmatpush1.bf16.xpose.msra.mxu0 %v1237
    %1256 = vmatprep.subr.bf16.mxu0 0
    %1257 = vmatpush1.bf16.xpose.msra.mxu0 %v1234
    %1258 = vmatprep.subr.bf16.mxu0 0
    %1259 = vmatpush1.bf16.xpose.msra.mxu0 %v1231
    %1260 = vmatprep.subr.bf16.mxu0 0
    %1261 = vmatpush1.bf16.xpose.msra.mxu0 %v1228
    %1262 = vmatprep.subr.bf16.mxu0 0
    %1263 = vmatpush1.bf16.xpose.msra.mxu0 %v1225
    %1264 = vmatprep.subr.bf16.mxu0 0
    %1265 = vmatpush2.bf16.xpose.msra.mxu0 0
    %1266 = vmatprep.subr.bf16.mxu0 0
    %1267 = vmatpush2.bf16.xpose.msra.mxu0 0
    %1268 = vmatprep.subr.bf16.mxu0 0
    %1269 = vmatpush2.bf16.xpose.msra.mxu0 0
    %1270 = vmatprep.subr.bf16.mxu0 0
    %1271 = vmatpush2.bf16.xpose.msra.mxu0 0
    %1272 = vmatprep.subr.bf16.mxu0 0
    %1273 = vmatpush2.bf16.xpose.msra.mxu0 0
    %1274 = vmatprep.subr.bf16.mxu0 0
    %1275 = vmatpush2.bf16.xpose.msra.mxu0 0
    %1276 = vmatprep.subr.bf16.mxu0 0
    %1277 = vmatpush2.bf16.xpose.msra.mxu0 0
    %1278 = vmatprep.subr.bf16.mxu0 0
    %1279 = vmatpush2.bf16.xpose.msra.mxu0 0
    %1280 = vmatprep.mubr.bf16.mxu0 0
    %1281 = vmatmul.mubr.bf16.gmra.mxu0 %v1222
    %v1282 = vpop.f32.mrf.mxu0
    %v1283 = vadd.f32 %v1219, %v1282
    %v1284 = vpop.f32.mrf.mxu0
    %v1285 = vpop.f32.mrf.mxu0
    %v1286 = vpop.f32.mrf.mxu0
    %1287 = vdwg.mxu0
    %1288 = vst [vmem:[%s13] sm:$0x1] %v1283
    // Predicated region
    $region50: #{ncf_forward.2} parent=1 // pred_check
      _
    $region51: #{ncf_forward.2} parent=1 // pred_check_branch
      %1290 = sbr.rel (0) target = $region53
    $region52: #{ncf_forward.2} parent=1 // pred_region
      _
    $region53: #{ncf_forward.2} parent=1 // pred_fallthru
      _
    // Predicated region
    $region54: #{ncf_forward.2} parent=1 // pred_check
      _
    $region55: #{ncf_forward.2} parent=1 // pred_check_branch
      %1292 = sbr.rel (0) target = $region57
    $region56: #{ncf_forward.2} parent=1 // pred_region
      _
    $region57: #{ncf_forward.2} parent=1 // pred_fallthru
      _

// kernel: ncf_forward.1
$region0: #{ncf_forward.1}
  #allocation0 [shape = 'u32[]', space=smem, size = 0x4, offset = 0x4, fixed_abs, tag = 'smem constant byte address 0x4 - core index']
  #allocation1 [shape = 'u32[144,128]{1,0:T(1,128)}', space=vmem, size = 0x12000, scoped, tag = 'internal scratch']
  #allocation2 [shape = 'f32[1,1]{1,0:T(1,128)S(6)}', space=smem, size = 0x200, scoped, tag = 'scoped memory for ncf_forward.1']
  %s0 = inlined_call_operand.vmem [shape: bf16[128,64], index: 0, kind: input, shape index: {}]
  %s1 = inlined_call_operand.vmem [shape: bf16[128,64], index: 1, kind: input, shape index: {}]
  %s2 = inlined_call_operand.vmem [shape: bf16[64,64], index: 2, kind: input, shape index: {}]
  %s3 = inlined_call_operand.vmem [shape: bf16[64,64], index: 3, kind: input, shape index: {}]
  %s4 = inlined_call_operand.vmem [shape: f32[1,64], index: 4, kind: input, shape index: {}]
  %s5 = inlined_call_operand.vmem [shape: bf16[64,32], index: 5, kind: input, shape index: {}]
  %s6 = inlined_call_operand.vmem [shape: f32[1,32], index: 6, kind: input, shape index: {}]
  %s7 = inlined_call_operand.vmem [shape: bf16[32,8], index: 7, kind: input, shape index: {}]
  %s8 = inlined_call_operand.vmem [shape: f32[1,8], index: 8, kind: input, shape index: {}]
  %s9 = inlined_call_operand.vmem [shape: bf16[1,8], index: 9, kind: input, shape index: {}]
  %s10 = inlined_call_operand.<no memory space> [shape: f32[1,1], index: 10, kind: input, shape index: {}]
  %s11 = inlined_call_operand.vmem [shape: f32[1,128], index: 11, kind: output, shape index: {}]
  %s12 = sld [smem:[#allocation0]]
  $region54: #{ncf_forward.1} parent=0
    _
  %s14 = ssub.s32 1, %s12
  %s15 = scalar_select 0, %s14, %s12
  %16 = sst [smem:[#allocation2]] %s10
  // Predicated region
  $region2: #{ncf_forward.1} parent=0 // pred_check
    _
  $region3: #{ncf_forward.1} parent=0 // pred_check_branch
    %18 = sbr.rel (0) target = $region5
  $region4: #{ncf_forward.1} parent=0 // pred_region
    _
  $region5: #{ncf_forward.1} parent=0 // pred_fallthru
    _
  // Predicated region
  $region6: #{ncf_forward.1} parent=0 // pred_check
    _
  $region7: #{ncf_forward.1} parent=0 // pred_check_branch
    %20 = sbr.rel (0) target = $region9
  $region8: #{ncf_forward.1} parent=0 // pred_region
    _
  $region9: #{ncf_forward.1} parent=0 // pred_fallthru
    _
  // Predicated region
  $region10: #{ncf_forward.1} parent=0 // pred_check
    _
  $region11: #{ncf_forward.1} parent=0 // pred_check_branch
    %22 = sbr.rel (0) target = $region13
  $region12: #{ncf_forward.1} parent=0 // pred_region
    _
  $region13: #{ncf_forward.1} parent=0 // pred_fallthru
    _
  // Predicated region
  $region14: #{ncf_forward.1} parent=0 // pred_check
    _
  $region15: #{ncf_forward.1} parent=0 // pred_check_branch
    %24 = sbr.rel (0) target = $region17
  $region16: #{ncf_forward.1} parent=0 // pred_region
    _
  $region17: #{ncf_forward.1} parent=0 // pred_fallthru
    _
  // Predicated region
  $region18: #{ncf_forward.1} parent=0 // pred_check
    _
  $region19: #{ncf_forward.1} parent=0 // pred_check_branch
    %26 = sbr.rel (0) target = $region21
  $region20: #{ncf_forward.1} parent=0 // pred_region
    _
  $region21: #{ncf_forward.1} parent=0 // pred_fallthru
    _
  // Predicated region
  $region22: #{ncf_forward.1} parent=0 // pred_check
    _
  $region23: #{ncf_forward.1} parent=0 // pred_check_branch
    %28 = sbr.rel (0) target = $region25
  $region24: #{ncf_forward.1} parent=0 // pred_region
    _
  $region25: #{ncf_forward.1} parent=0 // pred_fallthru
    _
  // Predicated region
  $region26: #{ncf_forward.1} parent=0 // pred_check
    _
  $region27: #{ncf_forward.1} parent=0 // pred_check_branch
    %30 = sbr.rel (0) target = $region29
  $region28: #{ncf_forward.1} parent=0 // pred_region
    _
  $region29: #{ncf_forward.1} parent=0 // pred_fallthru
    _
  // Predicated region
  $region30: #{ncf_forward.1} parent=0 // pred_check
    _
  $region31: #{ncf_forward.1} parent=0 // pred_check_branch
    %32 = sbr.rel (0) target = $region33
  $region32: #{ncf_forward.1} parent=0 // pred_region
    _
  $region33: #{ncf_forward.1} parent=0 // pred_fallthru
    _
  // Predicated region
  $region34: #{ncf_forward.1} parent=0 // pred_check
    _
  $region35: #{ncf_forward.1} parent=0 // pred_check_branch
    %34 = sbr.rel (0) target = $region37
  $region36: #{ncf_forward.1} parent=0 // pred_region
    _
  $region37: #{ncf_forward.1} parent=0 // pred_fallthru
    _
  // Predicated region
  $region38: #{ncf_forward.1} parent=0 // pred_check
    _
  $region39: #{ncf_forward.1} parent=0 // pred_check_branch
    %36 = sbr.rel (0) target = $region41
  $region40: #{ncf_forward.1} parent=0 // pred_region
    _
  $region41: #{ncf_forward.1} parent=0 // pred_fallthru
    _
  // Predicated region
  $region42: #{ncf_forward.1} parent=0 // pred_check
    _
  $region43: #{ncf_forward.1} parent=0 // pred_check_branch
    %38 = sbr.rel (0) target = $region45
  $region44: #{ncf_forward.1} parent=0 // pred_region
    _
  $region45: #{ncf_forward.1} parent=0 // pred_fallthru
    _
  %v40 = vld [vmem:[%s0] sm:$0xf]
  %v41 = vld [vmem:[%s0 + $0x4] sm:$0xf]
  %v42 = vld [vmem:[%s0 + $0x8] sm:$0xf]
  %v43 = vld [vmem:[%s0 + $0xc] sm:$0xf]
  %v44 = vld [vmem:[%s0 + $0x10] sm:$0xf]
  %v45 = vld [vmem:[%s0 + $0x14] sm:$0xf]
  %v46 = vld [vmem:[%s0 + $0x18] sm:$0xf]
  %v47 = vld [vmem:[%s0 + $0x1c] sm:$0xf]
  %v48 = vld [vmem:[%s0 + $0x20] sm:$0xf]
  %v49 = vld [vmem:[%s0 + $0x24] sm:$0xf]
  %v50 = vld [vmem:[%s0 + $0x28] sm:$0xf]
  %v51 = vld [vmem:[%s0 + $0x2c] sm:$0xf]
  %v52 = vld [vmem:[%s0 + $0x30] sm:$0xf]
  %v53 = vld [vmem:[%s0 + $0x34] sm:$0xf]
  %v54 = vld [vmem:[%s0 + $0x38] sm:$0xf]
  %v55 = vld [vmem:[%s0 + $0x3c] sm:$0xf]
  %v56 = vld [vmem:[%s2] sm:$0xf]
  %v57 = vld [vmem:[%s2 + $0x4] sm:$0xf]
  %v58 = vld [vmem:[%s2 + $0x8] sm:$0xf]
  %v59 = vld [vmem:[%s2 + $0xc] sm:$0xf]
  %v60 = vld [vmem:[%s2 + $0x10] sm:$0xf]
  %v61 = vld [vmem:[%s2 + $0x14] sm:$0xf]
  %v62 = vld [vmem:[%s2 + $0x18] sm:$0xf]
  %v63 = vld [vmem:[%s2 + $0x1c] sm:$0xf]
  %v64 = vld [vmem:[%s1] sm:$0xf]
  %v65 = vld [vmem:[%s1 + $0x4] sm:$0xf]
  %v66 = vld [vmem:[%s1 + $0x8] sm:$0xf]
  %v67 = vld [vmem:[%s1 + $0xc] sm:$0xf]
  %v68 = vld [vmem:[%s1 + $0x10] sm:$0xf]
  %v69 = vld [vmem:[%s1 + $0x14] sm:$0xf]
  %v70 = vld [vmem:[%s1 + $0x18] sm:$0xf]
  %v71 = vld [vmem:[%s1 + $0x1c] sm:$0xf]
  %v72 = vld [vmem:[%s1 + $0x20] sm:$0xf]
  %v73 = vld [vmem:[%s1 + $0x24] sm:$0xf]
  %v74 = vld [vmem:[%s1 + $0x28] sm:$0xf]
  %v75 = vld [vmem:[%s1 + $0x2c] sm:$0xf]
  %v76 = vld [vmem:[%s1 + $0x30] sm:$0xf]
  %v77 = vld [vmem:[%s1 + $0x34] sm:$0xf]
  %v78 = vld [vmem:[%s1 + $0x38] sm:$0xf]
  %v79 = vld [vmem:[%s1 + $0x3c] sm:$0xf]
  %v80 = vld [vmem:[%s3] sm:$0xf]
  %v81 = vld [vmem:[%s3 + $0x4] sm:$0xf]
  %v82 = vld [vmem:[%s3 + $0x8] sm:$0xf]
  %v83 = vld [vmem:[%s3 + $0xc] sm:$0xf]
  %v84 = vld [vmem:[%s3 + $0x10] sm:$0xf]
  %v85 = vld [vmem:[%s3 + $0x14] sm:$0xf]
  %v86 = vld [vmem:[%s3 + $0x18] sm:$0xf]
  %v87 = vld [vmem:[%s3 + $0x1c] sm:$0xf]
  %v104 = vunpack.c.l.b16 %v64
  %v105 = vunpack.c.l.b16 %v65
  %v106 = vunpack.c.l.b16 %v66
  %v107 = vunpack.c.l.b16 %v67
  %v108 = vunpack.c.l.b16 %v68
  %v109 = vunpack.c.l.b16 %v69
  %v110 = vunpack.c.l.b16 %v70
  %v111 = vunpack.c.l.b16 %v71
  %v112 = vunpack.c.l.b16 %v72
  %v113 = vunpack.c.l.b16 %v73
  %v114 = vunpack.c.l.b16 %v74
  %v115 = vunpack.c.l.b16 %v75
  %v116 = vunpack.c.l.b16 %v76
  %v117 = vunpack.c.l.b16 %v77
  %v118 = vunpack.c.l.b16 %v78
  %v119 = vunpack.c.l.b16 %v79
  %v120 = vpack.c.b16 %v105, %v104
  %v121 = vpack.c.b16 %v107, %v106
  %v122 = vpack.c.b16 %v109, %v108
  %v123 = vpack.c.b16 %v111, %v110
  %v124 = vpack.c.b16 %v113, %v112
  %v125 = vpack.c.b16 %v115, %v114
  %v126 = vpack.c.b16 %v117, %v116
  %v127 = vpack.c.b16 %v119, %v118
  %v136 = vunpack.c.l.b16 %v80
  %v137 = vunpack.c.l.b16 %v81
  %v138 = vunpack.c.l.b16 %v82
  %v139 = vunpack.c.l.b16 %v83
  %v140 = vunpack.c.l.b16 %v84
  %v141 = vunpack.c.l.b16 %v85
  %v142 = vunpack.c.l.b16 %v86
  %v143 = vunpack.c.l.b16 %v87
  %v144 = vpack.c.b16 %v137, %v136
  %v145 = vpack.c.b16 %v139, %v138
  %v146 = vpack.c.b16 %v141, %v140
  %v147 = vpack.c.b16 %v143, %v142
  %vm152 = vcmask 523264
  %v154 = vsel %vm152, %v120, 0
  %v157 = vsel %vm152, %v121, 0
  %v160 = vsel %vm152, %v122, 0
  %v163 = vsel %vm152, %v123, 0
  %v166 = vsel %vm152, %v124, 0
  %v169 = vsel %vm152, %v125, 0
  %v172 = vsel %vm152, %v126, 0
  %v175 = vsel %vm152, %v127, 0
  %177 = vmatprep.subr.bf16.mxu0 0
  %178 = vmatpush1.bf16.msra.mxu0 0
  %179 = vmatprep.subr.bf16.mxu0 0
  %180 = vmatpush1.bf16.msra.mxu0 0
  %181 = vmatprep.subr.bf16.mxu0 0
  %182 = vmatpush1.bf16.msra.mxu0 0
  %183 = vmatprep.subr.bf16.mxu0 0
  %184 = vmatpush1.bf16.msra.mxu0 0
  %185 = vmatprep.subr.bf16.mxu0 0
  %186 = vmatpush1.bf16.msra.mxu0 %v147
  %187 = vmatprep.subr.bf16.mxu0 0
  %188 = vmatpush1.bf16.msra.mxu0 %v146
  %189 = vmatprep.subr.bf16.mxu0 0
  %190 = vmatpush1.bf16.msra.mxu0 %v145
  %191 = vmatprep.subr.bf16.mxu0 0
  %192 = vmatpush1.bf16.msra.mxu0 %v144
  %193 = vmatprep.subr.bf16.mxu0 0
  %194 = vmatpush2.bf16.msra.mxu0 0
  %195 = vmatprep.subr.bf16.mxu0 0
  %196 = vmatpush2.bf16.msra.mxu0 0
  %197 = vmatprep.subr.bf16.mxu0 0
  %198 = vmatpush2.bf16.msra.mxu0 0
  %199 = vmatprep.subr.bf16.mxu0 0
  %200 = vmatpush2.bf16.msra.mxu0 0
  %201 = vmatprep.subr.bf16.mxu0 0
  %202 = vmatpush2.bf16.msra.mxu0 0
  %203 = vmatprep.subr.bf16.mxu0 0
  %204 = vmatpush2.bf16.msra.mxu0 0
  %205 = vmatprep.subr.bf16.mxu0 0
  %206 = vmatpush2.bf16.msra.mxu0 0
  %207 = vmatprep.subr.bf16.mxu0 0
  %208 = vmatpush2.bf16.msra.mxu0 0
  %209 = vmatprep.mubr.bf16.mxu0 0
  %210 = vmatmul.mubr.bf16.gmra.mxu0 %v154
  %v211 = vpop.f32.mrf.mxu0
  %v212 = vadd.f32 0.0, %v211
  %v213 = vpop.f32.mrf.mxu0
  %v214 = vpop.f32.mrf.mxu0
  %v215 = vadd.f32 0.0, %v214
  %v216 = vpop.f32.mrf.mxu0
  %217 = vmatprep.mubr.bf16.mxu0 0
  %218 = vmatmul.mubr.bf16.gmra.mxu0 %v157
  %v219 = vpop.f32.mrf.mxu0
  %v220 = vadd.f32 0.0, %v219
  %v221 = vpop.f32.mrf.mxu0
  %v222 = vpop.f32.mrf.mxu0
  %v223 = vadd.f32 0.0, %v222
  %v224 = vpop.f32.mrf.mxu0
  %225 = vmatprep.mubr.bf16.mxu0 0
  %226 = vmatmul.mubr.bf16.gmra.mxu0 %v160
  %v227 = vpop.f32.mrf.mxu0
  %v228 = vadd.f32 0.0, %v227
  %v229 = vpop.f32.mrf.mxu0
  %v230 = vpop.f32.mrf.mxu0
  %v231 = vadd.f32 0.0, %v230
  %v232 = vpop.f32.mrf.mxu0
  %233 = vmatprep.mubr.bf16.mxu0 0
  %234 = vmatmul.mubr.bf16.gmra.mxu0 %v163
  %v235 = vpop.f32.mrf.mxu0
  %v236 = vadd.f32 0.0, %v235
  %v237 = vpop.f32.mrf.mxu0
  %v238 = vpop.f32.mrf.mxu0
  %v239 = vadd.f32 0.0, %v238
  %v240 = vpop.f32.mrf.mxu0
  %241 = vmatprep.mubr.bf16.mxu0 0
  %242 = vmatmul.mubr.bf16.gmra.mxu0 %v166
  %v243 = vpop.f32.mrf.mxu0
  %v244 = vadd.f32 0.0, %v243
  %v245 = vpop.f32.mrf.mxu0
  %v246 = vpop.f32.mrf.mxu0
  %v247 = vadd.f32 0.0, %v246
  %v248 = vpop.f32.mrf.mxu0
  %249 = vmatprep.mubr.bf16.mxu0 0
  %250 = vmatmul.mubr.bf16.gmra.mxu0 %v169
  %v251 = vpop.f32.mrf.mxu0
  %v252 = vadd.f32 0.0, %v251
  %v253 = vpop.f32.mrf.mxu0
  %v254 = vpop.f32.mrf.mxu0
  %v255 = vadd.f32 0.0, %v254
  %v256 = vpop.f32.mrf.mxu0
  %257 = vmatprep.mubr.bf16.mxu0 0
  %258 = vmatmul.mubr.bf16.gmra.mxu0 %v172
  %v259 = vpop.f32.mrf.mxu0
  %v260 = vadd.f32 0.0, %v259
  %v261 = vpop.f32.mrf.mxu0
  %v262 = vpop.f32.mrf.mxu0
  %v263 = vadd.f32 0.0, %v262
  %v264 = vpop.f32.mrf.mxu0
  %265 = vmatprep.mubr.bf16.mxu0 0
  %266 = vmatmul.mubr.bf16.gmra.mxu0 %v175
  %v267 = vpop.f32.mrf.mxu0
  %v268 = vadd.f32 0.0, %v267
  %v269 = vpop.f32.mrf.mxu0
  %v270 = vpop.f32.mrf.mxu0
  %v271 = vadd.f32 0.0, %v270
  %v272 = vpop.f32.mrf.mxu0
  %273 = vdwg.mxu0
  %v290 = vunpack.c.l.b16 %v40
  %v291 = vunpack.c.l.b16 %v41
  %v292 = vunpack.c.l.b16 %v42
  %v293 = vunpack.c.l.b16 %v43
  %v294 = vunpack.c.l.b16 %v44
  %v295 = vunpack.c.l.b16 %v45
  %v296 = vunpack.c.l.b16 %v46
  %v297 = vunpack.c.l.b16 %v47
  %v298 = vunpack.c.l.b16 %v48
  %v299 = vunpack.c.l.b16 %v49
  %v300 = vunpack.c.l.b16 %v50
  %v301 = vunpack.c.l.b16 %v51
  %v302 = vunpack.c.l.b16 %v52
  %v303 = vunpack.c.l.b16 %v53
  %v304 = vunpack.c.l.b16 %v54
  %v305 = vunpack.c.l.b16 %v55
  %v306 = vpack.c.b16 %v291, %v290
  %v307 = vpack.c.b16 %v293, %v292
  %v308 = vpack.c.b16 %v295, %v294
  %v309 = vpack.c.b16 %v297, %v296
  %v310 = vpack.c.b16 %v299, %v298
  %v311 = vpack.c.b16 %v301, %v300
  %v312 = vpack.c.b16 %v303, %v302
  %v313 = vpack.c.b16 %v305, %v304
  %v322 = vunpack.c.l.b16 %v56
  %v323 = vunpack.c.l.b16 %v57
  %v324 = vunpack.c.l.b16 %v58
  %v325 = vunpack.c.l.b16 %v59
  %v326 = vunpack.c.l.b16 %v60
  %v327 = vunpack.c.l.b16 %v61
  %v328 = vunpack.c.l.b16 %v62
  %v329 = vunpack.c.l.b16 %v63
  %v330 = vpack.c.b16 %v323, %v322
  %v331 = vpack.c.b16 %v325, %v324
  %v332 = vpack.c.b16 %v327, %v326
  %v333 = vpack.c.b16 %v329, %v328
  %v339 = vsel %vm152, %v306, 0
  %v342 = vsel %vm152, %v307, 0
  %v345 = vsel %vm152, %v308, 0
  %v348 = vsel %vm152, %v309, 0
  %v351 = vsel %vm152, %v310, 0
  %v354 = vsel %vm152, %v311, 0
  %v357 = vsel %vm152, %v312, 0
  %v360 = vsel %vm152, %v313, 0
  %362 = vmatprep.subr.bf16.mxu0 0
  %363 = vmatpush1.bf16.msra.mxu0 0
  %364 = vmatprep.subr.bf16.mxu0 0
  %365 = vmatpush1.bf16.msra.mxu0 0
  %366 = vmatprep.subr.bf16.mxu0 0
  %367 = vmatpush1.bf16.msra.mxu0 0
  %368 = vmatprep.subr.bf16.mxu0 0
  %369 = vmatpush1.bf16.msra.mxu0 0
  %370 = vmatprep.subr.bf16.mxu0 0
  %371 = vmatpush1.bf16.msra.mxu0 %v333
  %372 = vmatprep.subr.bf16.mxu0 0
  %373 = vmatpush1.bf16.msra.mxu0 %v332
  %374 = vmatprep.subr.bf16.mxu0 0
  %375 = vmatpush1.bf16.msra.mxu0 %v331
  %376 = vmatprep.subr.bf16.mxu0 0
  %377 = vmatpush1.bf16.msra.mxu0 %v330
  %378 = vmatprep.subr.bf16.mxu0 0
  %379 = vmatpush2.bf16.msra.mxu0 0
  %380 = vmatprep.subr.bf16.mxu0 0
  %381 = vmatpush2.bf16.msra.mxu0 0
  %382 = vmatprep.subr.bf16.mxu0 0
  %383 = vmatpush2.bf16.msra.mxu0 0
  %384 = vmatprep.subr.bf16.mxu0 0
  %385 = vmatpush2.bf16.msra.mxu0 0
  %386 = vmatprep.subr.bf16.mxu0 0
  %387 = vmatpush2.bf16.msra.mxu0 0
  %388 = vmatprep.subr.bf16.mxu0 0
  %389 = vmatpush2.bf16.msra.mxu0 0
  %390 = vmatprep.subr.bf16.mxu0 0
  %391 = vmatpush2.bf16.msra.mxu0 0
  %392 = vmatprep.subr.bf16.mxu0 0
  %393 = vmatpush2.bf16.msra.mxu0 0
  %394 = vmatprep.mubr.bf16.mxu0 0
  %395 = vmatmul.mubr.bf16.gmra.mxu0 %v339
  %v396 = vpop.f32.mrf.mxu0
  %v397 = vadd.f32 %v212, %v396
  %v398 = vpop.f32.mrf.mxu0
  %v399 = vpop.f32.mrf.mxu0
  %v400 = vadd.f32 %v215, %v399
  %v401 = vpop.f32.mrf.mxu0
  %402 = vmatprep.mubr.bf16.mxu0 0
  %403 = vmatmul.mubr.bf16.gmra.mxu0 %v342
  %v404 = vpop.f32.mrf.mxu0
  %v405 = vadd.f32 %v220, %v404
  %v406 = vpop.f32.mrf.mxu0
  %v407 = vpop.f32.mrf.mxu0
  %v408 = vadd.f32 %v223, %v407
  %v409 = vpop.f32.mrf.mxu0
  %410 = vmatprep.mubr.bf16.mxu0 0
  %411 = vmatmul.mubr.bf16.gmra.mxu0 %v345
  %v412 = vpop.f32.mrf.mxu0
  %v413 = vadd.f32 %v228, %v412
  %v414 = vpop.f32.mrf.mxu0
  %v415 = vpop.f32.mrf.mxu0
  %v416 = vadd.f32 %v231, %v415
  %v417 = vpop.f32.mrf.mxu0
  %418 = vmatprep.mubr.bf16.mxu0 0
  %419 = vmatmul.mubr.bf16.gmra.mxu0 %v348
  %v420 = vpop.f32.mrf.mxu0
  %v421 = vadd.f32 %v236, %v420
  %v422 = vpop.f32.mrf.mxu0
  %v423 = vpop.f32.mrf.mxu0
  %v424 = vadd.f32 %v239, %v423
  %v425 = vpop.f32.mrf.mxu0
  %426 = vmatprep.mubr.bf16.mxu0 0
  %427 = vmatmul.mubr.bf16.gmra.mxu0 %v351
  %v428 = vpop.f32.mrf.mxu0
  %v429 = vadd.f32 %v244, %v428
  %v430 = vpop.f32.mrf.mxu0
  %v431 = vpop.f32.mrf.mxu0
  %v432 = vadd.f32 %v247, %v431
  %v433 = vpop.f32.mrf.mxu0
  %434 = vmatprep.mubr.bf16.mxu0 0
  %435 = vmatmul.mubr.bf16.gmra.mxu0 %v354
  %v436 = vpop.f32.mrf.mxu0
  %v437 = vadd.f32 %v252, %v436
  %v438 = vpop.f32.mrf.mxu0
  %v439 = vpop.f32.mrf.mxu0
  %v440 = vadd.f32 %v255, %v439
  %v441 = vpop.f32.mrf.mxu0
  %442 = vmatprep.mubr.bf16.mxu0 0
  %443 = vmatmul.mubr.bf16.gmra.mxu0 %v357
  %v444 = vpop.f32.mrf.mxu0
  %v445 = vadd.f32 %v260, %v444
  %v446 = vpop.f32.mrf.mxu0
  %v447 = vpop.f32.mrf.mxu0
  %v448 = vadd.f32 %v263, %v447
  %v449 = vpop.f32.mrf.mxu0
  %450 = vmatprep.mubr.bf16.mxu0 0
  %451 = vmatmul.mubr.bf16.gmra.mxu0 %v360
  %v452 = vpop.f32.mrf.mxu0
  %v453 = vadd.f32 %v268, %v452
  %v454 = vpop.f32.mrf.mxu0
  %v455 = vpop.f32.mrf.mxu0
  %v456 = vadd.f32 %v271, %v455
  %v457 = vpop.f32.mrf.mxu0
  %458 = vdwg.mxu0
  %v459 = vld [vmem:[%s4] sm:$0x1]
  %v461 = vlaneseq
  %v462 = vshrl.u32 %v461, 7
  %v463 = vsub.s32 0, %v462
  %v464 = vrot.slane %v459, %v463
  %v466 = vadd.f32 %v397, %v464
  %v467 = vadd.f32 %v400, %v464
  %v468 = vadd.f32 %v405, %v464
  %v469 = vadd.f32 %v408, %v464
  %v470 = vadd.f32 %v413, %v464
  %v471 = vadd.f32 %v416, %v464
  %v472 = vadd.f32 %v421, %v464
  %v473 = vadd.f32 %v424, %v464
  %v474 = vadd.f32 %v429, %v464
  %v475 = vadd.f32 %v432, %v464
  %v476 = vadd.f32 %v437, %v464
  %v477 = vadd.f32 %v440, %v464
  %v478 = vadd.f32 %v445, %v464
  %v479 = vadd.f32 %v448, %v464
  %v480 = vadd.f32 %v453, %v464
  %v481 = vadd.f32 %v456, %v464
  %v482 = vmax.f32 %v466, 0.0
  %v483 = vmax.f32 %v467, 0.0
  %v484 = vmax.f32 %v468, 0.0
  %v485 = vmax.f32 %v469, 0.0
  %v486 = vmax.f32 %v470, 0.0
  %v487 = vmax.f32 %v471, 0.0
  %v488 = vmax.f32 %v472, 0.0
  %v489 = vmax.f32 %v473, 0.0
  %v490 = vmax.f32 %v474, 0.0
  %v491 = vmax.f32 %v475, 0.0
  %v492 = vmax.f32 %v476, 0.0
  %v493 = vmax.f32 %v477, 0.0
  %v494 = vmax.f32 %v478, 0.0
  %v495 = vmax.f32 %v479, 0.0
  %v496 = vmax.f32 %v480, 0.0
  %v497 = vmax.f32 %v481, 0.0
  %v498 = vpack.c.bf16 %v483, %v482
  %v499 = vpack.c.bf16 %v485, %v484
  %v500 = vpack.c.bf16 %v487, %v486
  %v501 = vpack.c.bf16 %v489, %v488
  %v502 = vpack.c.bf16 %v491, %v490
  %v503 = vpack.c.bf16 %v493, %v492
  %v504 = vpack.c.bf16 %v495, %v494
  %v505 = vpack.c.bf16 %v497, %v496
  %v506 = vld [vmem:[%s5] sm:$0xf]
  %v507 = vld [vmem:[%s5 + $0x4] sm:$0xf]
  %v508 = vld [vmem:[%s5 + $0x8] sm:$0xf]
  %v509 = vld [vmem:[%s5 + $0xc] sm:$0xf]
  %v510 = vld [vmem:[%s5 + $0x10] sm:$0xf]
  %v511 = vld [vmem:[%s5 + $0x14] sm:$0xf]
  %v512 = vld [vmem:[%s5 + $0x18] sm:$0xf]
  %v513 = vld [vmem:[%s5 + $0x1c] sm:$0xf]
  %v514 = vld [vmem:[%s6] sm:$0x1]
  %v516 = vlaneseq
  %v517 = vshrl.u32 %v516, 7
  %v518 = vsub.s32 0, %v517
  %v519 = vrot.slane %v514, %v518
  %v529 = vunpack.c.l.b16 %v506
  %v530 = vunpack.c.l.b16 %v507
  %v531 = vunpack.c.l.b16 %v508
  %v532 = vunpack.c.l.b16 %v509
  %v533 = vunpack.c.l.b16 %v510
  %v534 = vunpack.c.l.b16 %v511
  %v535 = vunpack.c.l.b16 %v512
  %v536 = vunpack.c.l.b16 %v513
  %v537 = vpack.c.b16 %v530, %v529
  %v538 = vpack.c.b16 %v532, %v531
  %v539 = vpack.c.b16 %v534, %v533
  %v540 = vpack.c.b16 %v536, %v535
  %v546 = vsel %vm152, %v498, 0
  %v549 = vsel %vm152, %v499, 0
  %v552 = vsel %vm152, %v500, 0
  %v555 = vsel %vm152, %v501, 0
  %v558 = vsel %vm152, %v502, 0
  %v561 = vsel %vm152, %v503, 0
  %v564 = vsel %vm152, %v504, 0
  %v567 = vsel %vm152, %v505, 0
  %569 = vmatprep.subr.bf16.mxu0 0
  %570 = vmatpush1.bf16.msra.mxu0 0
  %571 = vmatprep.subr.bf16.mxu0 0
  %572 = vmatpush1.bf16.msra.mxu0 0
  %573 = vmatprep.subr.bf16.mxu0 0
  %574 = vmatpush1.bf16.msra.mxu0 0
  %575 = vmatprep.subr.bf16.mxu0 0
  %576 = vmatpush1.bf16.msra.mxu0 0
  %577 = vmatprep.subr.bf16.mxu0 0
  %578 = vmatpush1.bf16.msra.mxu0 %v540
  %579 = vmatprep.subr.bf16.mxu0 0
  %580 = vmatpush1.bf16.msra.mxu0 %v539
  %581 = vmatprep.subr.bf16.mxu0 0
  %582 = vmatpush1.bf16.msra.mxu0 %v538
  %583 = vmatprep.subr.bf16.mxu0 0
  %584 = vmatpush1.bf16.msra.mxu0 %v537
  %585 = vmatprep.subr.bf16.mxu0 0
  %586 = vmatpush2.bf16.msra.mxu0 0
  %587 = vmatprep.subr.bf16.mxu0 0
  %588 = vmatpush2.bf16.msra.mxu0 0
  %589 = vmatprep.subr.bf16.mxu0 0
  %590 = vmatpush2.bf16.msra.mxu0 0
  %591 = vmatprep.subr.bf16.mxu0 0
  %592 = vmatpush2.bf16.msra.mxu0 0
  %593 = vmatprep.subr.bf16.mxu0 0
  %594 = vmatpush2.bf16.msra.mxu0 0
  %595 = vmatprep.subr.bf16.mxu0 0
  %596 = vmatpush2.bf16.msra.mxu0 0
  %597 = vmatprep.subr.bf16.mxu0 0
  %598 = vmatpush2.bf16.msra.mxu0 0
  %599 = vmatprep.subr.bf16.mxu0 0
  %600 = vmatpush2.bf16.msra.mxu0 0
  %601 = vmatprep.mubr.bf16.mxu0 0
  %602 = vmatmul.mubr.bf16.gmra.mxu0 %v546
  %v603 = vpop.f32.mrf.mxu0
  %v604 = vadd.f32 %v519, %v603
  %v605 = vpop.f32.mrf.mxu0
  %v606 = vpop.f32.mrf.mxu0
  %v607 = vadd.f32 %v519, %v606
  %v608 = vpop.f32.mrf.mxu0
  %609 = vmatprep.mubr.bf16.mxu0 0
  %610 = vmatmul.mubr.bf16.gmra.mxu0 %v549
  %v611 = vpop.f32.mrf.mxu0
  %v612 = vadd.f32 %v519, %v611
  %v613 = vpop.f32.mrf.mxu0
  %v614 = vpop.f32.mrf.mxu0
  %v615 = vadd.f32 %v519, %v614
  %v616 = vpop.f32.mrf.mxu0
  %617 = vmatprep.mubr.bf16.mxu0 0
  %618 = vmatmul.mubr.bf16.gmra.mxu0 %v552
  %v619 = vpop.f32.mrf.mxu0
  %v620 = vadd.f32 %v519, %v619
  %v621 = vpop.f32.mrf.mxu0
  %v622 = vpop.f32.mrf.mxu0
  %v623 = vadd.f32 %v519, %v622
  %v624 = vpop.f32.mrf.mxu0
  %625 = vmatprep.mubr.bf16.mxu0 0
  %626 = vmatmul.mubr.bf16.gmra.mxu0 %v555
  %v627 = vpop.f32.mrf.mxu0
  %v628 = vadd.f32 %v519, %v627
  %v629 = vpop.f32.mrf.mxu0
  %v630 = vpop.f32.mrf.mxu0
  %v631 = vadd.f32 %v519, %v630
  %v632 = vpop.f32.mrf.mxu0
  %633 = vmatprep.mubr.bf16.mxu0 0
  %634 = vmatmul.mubr.bf16.gmra.mxu0 %v558
  %v635 = vpop.f32.mrf.mxu0
  %v636 = vadd.f32 %v519, %v635
  %v637 = vpop.f32.mrf.mxu0
  %v638 = vpop.f32.mrf.mxu0
  %v639 = vadd.f32 %v519, %v638
  %v640 = vpop.f32.mrf.mxu0
  %641 = vmatprep.mubr.bf16.mxu0 0
  %642 = vmatmul.mubr.bf16.gmra.mxu0 %v561
  %v643 = vpop.f32.mrf.mxu0
  %v644 = vadd.f32 %v519, %v643
  %v645 = vpop.f32.mrf.mxu0
  %v646 = vpop.f32.mrf.mxu0
  %v647 = vadd.f32 %v519, %v646
  %v648 = vpop.f32.mrf.mxu0
  %649 = vmatprep.mubr.bf16.mxu0 0
  %650 = vmatmul.mubr.bf16.gmra.mxu0 %v564
  %v651 = vpop.f32.mrf.mxu0
  %v652 = vadd.f32 %v519, %v651
  %v653 = vpop.f32.mrf.mxu0
  %v654 = vpop.f32.mrf.mxu0
  %v655 = vadd.f32 %v519, %v654
  %v656 = vpop.f32.mrf.mxu0
  %657 = vmatprep.mubr.bf16.mxu0 0
  %658 = vmatmul.mubr.bf16.gmra.mxu0 %v567
  %v659 = vpop.f32.mrf.mxu0
  %v660 = vadd.f32 %v519, %v659
  %v661 = vpop.f32.mrf.mxu0
  %v662 = vpop.f32.mrf.mxu0
  %v663 = vadd.f32 %v519, %v662
  %v664 = vpop.f32.mrf.mxu0
  %665 = vdwg.mxu0
  %v666 = vmax.f32 %v604, 0.0
  %v667 = vmax.f32 %v607, 0.0
  %v668 = vmax.f32 %v612, 0.0
  %v669 = vmax.f32 %v615, 0.0
  %v670 = vmax.f32 %v620, 0.0
  %v671 = vmax.f32 %v623, 0.0
  %v672 = vmax.f32 %v628, 0.0
  %v673 = vmax.f32 %v631, 0.0
  %v674 = vmax.f32 %v636, 0.0
  %v675 = vmax.f32 %v639, 0.0
  %v676 = vmax.f32 %v644, 0.0
  %v677 = vmax.f32 %v647, 0.0
  %v678 = vmax.f32 %v652, 0.0
  %v679 = vmax.f32 %v655, 0.0
  %v680 = vmax.f32 %v660, 0.0
  %v681 = vmax.f32 %v663, 0.0
  %v682 = vpack.c.bf16 %v667, %v666
  %v683 = vpack.c.bf16 %v669, %v668
  %v684 = vpack.c.bf16 %v671, %v670
  %v685 = vpack.c.bf16 %v673, %v672
  %v686 = vpack.c.bf16 %v675, %v674
  %v687 = vpack.c.bf16 %v677, %v676
  %v688 = vpack.c.bf16 %v679, %v678
  %v689 = vpack.c.bf16 %v681, %v680
  %v690 = vld [vmem:[%s7] sm:$0xf]
  %v691 = vld [vmem:[%s7 + $0x4] sm:$0xf]
  %v692 = vld [vmem:[%s7 + $0x8] sm:$0xf]
  %v693 = vld [vmem:[%s7 + $0xc] sm:$0xf]
  %v694 = vld [vmem:[%s8] sm:$0x1]
  %v696 = vlaneseq
  %v697 = vshrl.u32 %v696, 7
  %v698 = vsub.s32 0, %v697
  %v699 = vrot.slane %v694, %v698
  %v705 = vunpack.c.l.b16 %v690
  %v706 = vunpack.c.l.b16 %v691
  %v707 = vunpack.c.l.b16 %v692
  %v708 = vunpack.c.l.b16 %v693
  %v709 = vpack.c.b16 %v706, %v705
  %v710 = vpack.c.b16 %v708, %v707
  %vm713 = vcmask 261120
  %v715 = vsel %vm713, %v682, 0
  %v718 = vsel %vm713, %v683, 0
  %v721 = vsel %vm713, %v684, 0
  %v724 = vsel %vm713, %v685, 0
  %v727 = vsel %vm713, %v686, 0
  %v730 = vsel %vm713, %v687, 0
  %v733 = vsel %vm713, %v688, 0
  %v736 = vsel %vm713, %v689, 0
  %738 = vmatprep.subr.bf16.mxu0 0
  %739 = vmatpush1.bf16.msra.mxu0 0
  %740 = vmatprep.subr.bf16.mxu0 0
  %741 = vmatpush1.bf16.msra.mxu0 0
  %742 = vmatprep.subr.bf16.mxu0 0
  %743 = vmatpush1.bf16.msra.mxu0 0
  %744 = vmatprep.subr.bf16.mxu0 0
  %745 = vmatpush1.bf16.msra.mxu0 0
  %746 = vmatprep.subr.bf16.mxu0 0
  %747 = vmatpush1.bf16.msra.mxu0 0
  %748 = vmatprep.subr.bf16.mxu0 0
  %749 = vmatpush1.bf16.msra.mxu0 0
  %750 = vmatprep.subr.bf16.mxu0 0
  %751 = vmatpush1.bf16.msra.mxu0 %v710
  %752 = vmatprep.subr.bf16.mxu0 0
  %753 = vmatpush1.bf16.msra.mxu0 %v709
  %754 = vmatprep.subr.bf16.mxu0 0
  %755 = vmatpush2.bf16.msra.mxu0 0
  %756 = vmatprep.subr.bf16.mxu0 0
  %757 = vmatpush2.bf16.msra.mxu0 0
  %758 = vmatprep.subr.bf16.mxu0 0
  %759 = vmatpush2.bf16.msra.mxu0 0
  %760 = vmatprep.subr.bf16.mxu0 0
  %761 = vmatpush2.bf16.msra.mxu0 0
  %762 = vmatprep.subr.bf16.mxu0 0
  %763 = vmatpush2.bf16.msra.mxu0 0
  %764 = vmatprep.subr.bf16.mxu0 0
  %765 = vmatpush2.bf16.msra.mxu0 0
  %766 = vmatprep.subr.bf16.mxu0 0
  %767 = vmatpush2.bf16.msra.mxu0 0
  %768 = vmatprep.subr.bf16.mxu0 0
  %769 = vmatpush2.bf16.msra.mxu0 0
  %770 = vmatprep.mubr.bf16.mxu0 0
  %771 = vmatmul.mubr.bf16.gmra.mxu0 %v715
  %v772 = vpop.f32.mrf.mxu0
  %v773 = vadd.f32 %v699, %v772
  %v774 = vpop.f32.mrf.mxu0
  %v775 = vpop.f32.mrf.mxu0
  %v776 = vadd.f32 %v699, %v775
  %v777 = vpop.f32.mrf.mxu0
  %778 = vmatprep.mubr.bf16.mxu0 0
  %779 = vmatmul.mubr.bf16.gmra.mxu0 %v718
  %v780 = vpop.f32.mrf.mxu0
  %v781 = vadd.f32 %v699, %v780
  %v782 = vpop.f32.mrf.mxu0
  %v783 = vpop.f32.mrf.mxu0
  %v784 = vadd.f32 %v699, %v783
  %v785 = vpop.f32.mrf.mxu0
  %786 = vmatprep.mubr.bf16.mxu0 0
  %787 = vmatmul.mubr.bf16.gmra.mxu0 %v721
  %v788 = vpop.f32.mrf.mxu0
  %v789 = vadd.f32 %v699, %v788
  %v790 = vpop.f32.mrf.mxu0
  %v791 = vpop.f32.mrf.mxu0
  %v792 = vadd.f32 %v699, %v791
  %v793 = vpop.f32.mrf.mxu0
  %794 = vmatprep.mubr.bf16.mxu0 0
  %795 = vmatmul.mubr.bf16.gmra.mxu0 %v724
  %v796 = vpop.f32.mrf.mxu0
  %v797 = vadd.f32 %v699, %v796
  %v798 = vpop.f32.mrf.mxu0
  %v799 = vpop.f32.mrf.mxu0
  %v800 = vadd.f32 %v699, %v799
  %v801 = vpop.f32.mrf.mxu0
  %802 = vmatprep.mubr.bf16.mxu0 0
  %803 = vmatmul.mubr.bf16.gmra.mxu0 %v727
  %v804 = vpop.f32.mrf.mxu0
  %v805 = vadd.f32 %v699, %v804
  %v806 = vpop.f32.mrf.mxu0
  %v807 = vpop.f32.mrf.mxu0
  %v808 = vadd.f32 %v699, %v807
  %v809 = vpop.f32.mrf.mxu0
  %810 = vmatprep.mubr.bf16.mxu0 0
  %811 = vmatmul.mubr.bf16.gmra.mxu0 %v730
  %v812 = vpop.f32.mrf.mxu0
  %v813 = vadd.f32 %v699, %v812
  %v814 = vpop.f32.mrf.mxu0
  %v815 = vpop.f32.mrf.mxu0
  %v816 = vadd.f32 %v699, %v815
  %v817 = vpop.f32.mrf.mxu0
  %818 = vmatprep.mubr.bf16.mxu0 0
  %819 = vmatmul.mubr.bf16.gmra.mxu0 %v733
  %v820 = vpop.f32.mrf.mxu0
  %v821 = vadd.f32 %v699, %v820
  %v822 = vpop.f32.mrf.mxu0
  %v823 = vpop.f32.mrf.mxu0
  %v824 = vadd.f32 %v699, %v823
  %v825 = vpop.f32.mrf.mxu0
  %826 = vmatprep.mubr.bf16.mxu0 0
  %827 = vmatmul.mubr.bf16.gmra.mxu0 %v736
  %v828 = vpop.f32.mrf.mxu0
  %v829 = vadd.f32 %v699, %v828
  %v830 = vpop.f32.mrf.mxu0
  %v831 = vpop.f32.mrf.mxu0
  %v832 = vadd.f32 %v699, %v831
  %v833 = vpop.f32.mrf.mxu0
  %834 = vdwg.mxu0
  %v835 = vmax.f32 %v773, 0.0
  %v836 = vmax.f32 %v776, 0.0
  %v837 = vmax.f32 %v781, 0.0
  %v838 = vmax.f32 %v784, 0.0
  %v839 = vmax.f32 %v789, 0.0
  %v840 = vmax.f32 %v792, 0.0
  %v841 = vmax.f32 %v797, 0.0
  %v842 = vmax.f32 %v800, 0.0
  %v843 = vmax.f32 %v805, 0.0
  %v844 = vmax.f32 %v808, 0.0
  %v845 = vmax.f32 %v813, 0.0
  %v846 = vmax.f32 %v816, 0.0
  %v847 = vmax.f32 %v821, 0.0
  %v848 = vmax.f32 %v824, 0.0
  %v849 = vmax.f32 %v829, 0.0
  %v850 = vmax.f32 %v832, 0.0
  %v851 = vpack.c.bf16 %v836, %v835
  %v852 = vpack.c.bf16 %v838, %v837
  %v853 = vpack.c.bf16 %v840, %v839
  %v854 = vpack.c.bf16 %v842, %v841
  %v855 = vpack.c.bf16 %v844, %v843
  %v856 = vpack.c.bf16 %v846, %v845
  %v857 = vpack.c.bf16 %v848, %v847
  %v858 = vpack.c.bf16 %v850, %v849
  %v859 = vld [vmem:[%s9] sm:$0x1]
  %s860 = sld [smem:[#allocation2]]
  %v861 = vstv %s860
  %vm862 = vcmask 64512
  %v864 = vsel %vm862, %v859, 0
  %v867 = vsel %vm862, %v851, 0
  %v870 = vsel %vm862, %v852, 0
  %v873 = vsel %vm862, %v853, 0
  %v876 = vsel %vm862, %v854, 0
  %v879 = vsel %vm862, %v855, 0
  %v882 = vsel %vm862, %v856, 0
  %v885 = vsel %vm862, %v857, 0
  %v888 = vsel %vm862, %v858, 0
  %890 = vmatprep.subr.bf16.mxu0 0
  %891 = vmatpush1.bf16.xpose.msra.mxu0 %v888
  %892 = vmatprep.subr.bf16.mxu0 0
  %893 = vmatpush1.bf16.xpose.msra.mxu0 %v885
  %894 = vmatprep.subr.bf16.mxu0 0
  %895 = vmatpush1.bf16.xpose.msra.mxu0 %v882
  %896 = vmatprep.subr.bf16.mxu0 0
  %897 = vmatpush1.bf16.xpose.msra.mxu0 %v879
  %898 = vmatprep.subr.bf16.mxu0 0
  %899 = vmatpush1.bf16.xpose.msra.mxu0 %v876
  %900 = vmatprep.subr.bf16.mxu0 0
  %901 = vmatpush1.bf16.xpose.msra.mxu0 %v873
  %902 = vmatprep.subr.bf16.mxu0 0
  %903 = vmatpush1.bf16.xpose.msra.mxu0 %v870
  %904 = vmatprep.subr.bf16.mxu0 0
  %905 = vmatpush1.bf16.xpose.msra.mxu0 %v867
  %906 = vmatprep.subr.bf16.mxu0 0
  %907 = vmatpush2.bf16.xpose.msra.mxu0 0
  %908 = vmatprep.subr.bf16.mxu0 0
  %909 = vmatpush2.bf16.xpose.msra.mxu0 0
  %910 = vmatprep.subr.bf16.mxu0 0
  %911 = vmatpush2.bf16.xpose.msra.mxu0 0
  %912 = vmatprep.subr.bf16.mxu0 0
  %913 = vmatpush2.bf16.xpose.msra.mxu0 0
  %914 = vmatprep.subr.bf16.mxu0 0
  %915 = vmatpush2.bf16.xpose.msra.mxu0 0
  %916 = vmatprep.subr.bf16.mxu0 0
  %917 = vmatpush2.bf16.xpose.msra.mxu0 0
  %918 = vmatprep.subr.bf16.mxu0 0
  %919 = vmatpush2.bf16.xpose.msra.mxu0 0
  %920 = vmatprep.subr.bf16.mxu0 0
  %921 = vmatpush2.bf16.xpose.msra.mxu0 0
  %922 = vmatprep.mubr.bf16.mxu0 0
  %923 = vmatmul.mubr.bf16.gmra.mxu0 %v864
  %v924 = vpop.f32.mrf.mxu0
  %v925 = vadd.f32 %v861, %v924
  %v926 = vpop.f32.mrf.mxu0
  %v927 = vpop.f32.mrf.mxu0
  %v928 = vpop.f32.mrf.mxu0
  %929 = vdwg.mxu0
  %930 = vst [vmem:[%s11] sm:$0x1] %v925
  // Predicated region
  $region46: #{ncf_forward.1} parent=0 // pred_check
    _
  $region47: #{ncf_forward.1} parent=0 // pred_check_branch
    %932 = sbr.rel (0) target = $region49
  $region48: #{ncf_forward.1} parent=0 // pred_region
    _
  $region49: #{ncf_forward.1} parent=0 // pred_fallthru
    _
  // Predicated region
  $region50: #{ncf_forward.1} parent=0 // pred_check
    _
  $region51: #{ncf_forward.1} parent=0 // pred_check_branch
    %934 = sbr.rel (0) target = $region53
  $region52: #{ncf_forward.1} parent=0 // pred_region
    _
  $region53: #{ncf_forward.1} parent=0 // pred_fallthru
    _

</llo_original>
